<compile_context>
chip_gen: v7x
topology: tpu7x:2x2x1
jax: 0.10.0
libtpu: 0.0.40
codegen_flags: <defaults>
</compile_context>

<pallas_src>
import functools

import jax
import jax.numpy as jnp
from jax import lax
from jax.experimental import pallas as pl
from jax.experimental.pallas import tpu as pltpu

BN_EPS = 1e-5


def _conv_stats_kernel(x_ref, w_ref, mask_ref, conv_ref, stats_ref, *, K, W, pad):
    """Per-image conv (K*K roll+mask+matmul taps) + BatchNorm partial statistics.

    x_ref    : (Cin, H*W)       one image, channel-major, H*W on the lane axis
    w_ref    : (K*K, Cout, Cin) per-tap weight matrices
    mask_ref : (K*K, 1, H*W)    'same'-padding validity masks ({0,1})
    conv_ref : (Cout, H*W)      f32 conv output (lane-dense)
    stats_ref: (Cout, 2)        f32 per-image [sum, sum_sq] over H*W
    """
    hw = x_ref.shape[1]
    cout = w_ref.shape[1]

    x = x_ref[...]                                     # load once, reuse for all taps
    acc = jnp.zeros((cout, hw), jnp.float32)
    for kh in range(K):
        for kw in range(K):
            t = kh * K + kw
            # Output (h, w) reads input (h + kh - pad, w + kw - pad); on the flattened
            # H*W axis that is a constant shift -> one cheap XLU lane rotation, with
            # out-of-image positions zeroed by the mask (== 'same' zero padding).
            shift = (kh - pad) * W + (kw - pad)
            r = (-shift) % hw
            shifted = x if r == 0 else pltpu.roll(x, shift=r, axis=1)
            acc = acc + jnp.dot(w_ref[t], shifted * mask_ref[t],
                                preferred_element_type=jnp.float32)

    conv_ref[...] = acc
    # Per-image BN partial sums (finalized across the batch in the wrapper).  Every
    # grid step covers exactly one full image, so no partial-tile masking is needed.
    stats_ref[:, 0:1] = jnp.sum(acc, axis=1, keepdims=True)
    stats_ref[:, 1:2] = jnp.sum(acc * acc, axis=1, keepdims=True)


def _bn_relu_kernel(conv_ref, ss_ref, out_ref):
    """Fused folded-BatchNorm + ReLU finalize: out = max(conv*scale + shift, 0).

    conv_ref: (Cout, H*W) f32 conv block (aliased in place onto out_ref)
    ss_ref  : (Cout, 2)   f32 [scale, shift] with scale = gamma*rsqrt(var+eps),
                          shift = beta - mean*scale
    out_ref : (Cout, H*W)
    """
    scale = ss_ref[:, 0:1]
    shift = ss_ref[:, 1:2]
    out_ref[...] = jnp.maximum(conv_ref[...] * scale + shift, 0.0).astype(out_ref.dtype)


@functools.partial(jax.jit, static_argnames=("stride", "compute_dtype"))
def resnest_conv_block(x_nchw, w_oihw, gamma, beta, *, stride=1,
                       compute_dtype=jnp.bfloat16):
    """Conv2d(padding='same', bias=False) -> BatchNorm2d(train) -> ReLU.

    x_nchw: (N, Cin, H, W).  w_oihw: (Cout, Cin, K, K) (PyTorch layout).
    Returns (N, Cout, H, W).  MXU operands run in `compute_dtype` (bf16 by default);
    accumulation and all BatchNorm math stay in f32.
    """
    assert stride == 1, "PyTorch Conv2d(padding='same') requires stride == 1"
    N, Cin, H, W = x_nchw.shape
    Cout, _, K, _ = w_oihw.shape
    assert K % 2 == 1, "odd kernel size assumed for symmetric 'same' padding"
    pad = (K - 1) // 2
    HW = H * W
    cdt = jnp.dtype(compute_dtype)

    # ---- layout plumbing (free / tiny; no 9x im2col slab, no transposes of x) ----
    x_flat = x_nchw.reshape(N, Cin, HW).astype(cdt)                         # (N,Cin,HW)
    # (Cout, Cin, K, K) -> (K*K, Cout, Cin): one ready-to-use MXU LHS per tap.
    w_taps = jnp.transpose(w_oihw, (2, 3, 0, 1)).reshape(K * K, Cout, Cin).astype(cdt)
    # Per-tap 'same'-padding validity masks over output positions (trace-time consts).
    hh = jnp.arange(H, dtype=jnp.int32).reshape(H, 1)
    ww = jnp.arange(W, dtype=jnp.int32).reshape(1, W)
    masks = []
    for kh in range(K):
        for kw in range(K):
            valid = ((hh + (kh - pad) >= 0) & (hh + (kh - pad) < H) &
                     (ww + (kw - pad) >= 0) & (ww + (kw - pad) < W))
            masks.append(valid.reshape(1, HW))
    tap_masks = jnp.stack(masks, axis=0).astype(cdt)                        # (K*K,1,HW)

    cparams = pltpu.CompilerParams(
        dimension_semantics=("parallel",),        # batch axis -> both TCs on v7x
        vmem_limit_bytes=64 * 1024 * 1024)

    # ---- pass 1: conv + per-image BN partial sums (lane-dense (Cout, HW) blocks) ----
    conv_flat, stats = pl.pallas_call(
        functools.partial(_conv_stats_kernel, K=K, W=W, pad=pad),
        grid=(N,),
        in_specs=[
            pl.BlockSpec((None, Cin, HW), lambda n: (n, 0, 0)),
            pl.BlockSpec((K * K, Cout, Cin), lambda n: (0, 0, 0)),
            pl.BlockSpec((K * K, 1, HW), lambda n: (0, 0, 0)),
        ],
        out_specs=[
            pl.BlockSpec((None, Cout, HW), lambda n: (n, 0, 0)),
            pl.BlockSpec((None, Cout, 2), lambda n: (n, 0, 0)),
        ],
        out_shape=[
            jax.ShapeDtypeStruct((N, Cout, HW), jnp.float32),
            jax.ShapeDtypeStruct((N, Cout, 2), jnp.float32),
        ],
        compiler_params=cparams,
    )(x_flat, w_taps, tap_masks)

    # ---- BN finalize (Cout-sized, plain JAX, f32): fold into one scale/shift ----
    cnt = jnp.float32(N * HW)
    s_tot = jnp.sum(stats[..., 0], axis=0)                                  # (Cout,)
    ss_tot = jnp.sum(stats[..., 1], axis=0)
    mean = s_tot / cnt
    var = jnp.maximum(ss_tot / cnt - mean * mean, 0.0)      # clamp: cancellation guard
    scale = gamma.astype(jnp.float32) * lax.rsqrt(var + BN_EPS)
    shift = beta.astype(jnp.float32) - mean * scale
    scale_shift = jnp.stack([scale, shift], axis=1)                         # (Cout, 2)

    # ---- pass 2: fused scale*x + shift -> ReLU, written in place over the conv ----
    out_flat = pl.pallas_call(
        _bn_relu_kernel,
        grid=(N,),
        in_specs=[
            pl.BlockSpec((None, Cout, HW), lambda n: (n, 0, 0)),
            pl.BlockSpec((Cout, 2), lambda n: (0, 0)),
        ],
        out_specs=pl.BlockSpec((None, Cout, HW), lambda n: (n, 0, 0)),
        out_shape=jax.ShapeDtypeStruct((N, Cout, HW), jnp.float32),
        input_output_aliases={0: 0},
        compiler_params=cparams,
    )(conv_flat, scale_shift)

    # Free metadata reshape -- no transpose; kernel already wrote NCHW-flat blocks.
    return out_flat.reshape(N, Cout, H, W).astype(x_nchw.dtype)


def _reference(x_nchw, w_oihw, gamma, beta, compute_dtype):
    """Pure-JAX reference: Conv2d('same', no bias) -> BatchNorm2d(train) -> ReLU."""
    y = lax.conv_general_dilated(
        x_nchw.astype(compute_dtype), w_oihw.astype(compute_dtype),
        window_strides=(1, 1), padding="SAME",
        dimension_numbers=("NCHW", "OIHW", "NCHW"),
        preferred_element_type=jnp.float32)
    mean = y.mean(axis=(0, 2, 3), keepdims=True)
    var = ((y - mean) ** 2).mean(axis=(0, 2, 3), keepdims=True)
    yn = (y - mean) * lax.rsqrt(var + BN_EPS)
    yn = yn * gamma.reshape(1, -1, 1, 1) + beta.reshape(1, -1, 1, 1)
    return jnp.maximum(yn, 0.0)


if __name__ == "__main__":
    # Small shapes consistent with the module: batch=2, in_channels=4, out_channels=8,
    # spatial=16x16, kernel_size=3, stride=1.
    N, Cin, Cout, H, W, K = 2, 4, 8, 16, 16, 3

    key = jax.random.PRNGKey(0)
    kx, kwt, kg, kb = jax.random.split(key, 4)
    x = jax.random.normal(kx, (N, Cin, H, W), dtype=jnp.float32)
    # Conv weight in PyTorch OIHW layout (Cout, Cin, K, K); deterministic init.
    w = 0.1 * jax.random.normal(kwt, (Cout, Cin, K, K), dtype=jnp.float32)
    # BatchNorm affine params (PyTorch default is ones/zeros; perturb deterministically).
    gamma = 1.0 + 0.1 * jax.random.normal(kg, (Cout,), dtype=jnp.float32)
    beta = 0.1 * jax.random.normal(kb, (Cout,), dtype=jnp.float32)

    # Strict f32 path: exact module semantics.
    out_f32 = jax.block_until_ready(
        resnest_conv_block(x, w, gamma, beta, stride=1, compute_dtype=jnp.float32))
    ref_f32 = _reference(x, w, gamma, beta, jnp.float32)
    assert out_f32.shape == (N, Cout, H, W)
    assert jnp.allclose(out_f32, ref_f32, atol=5e-4, rtol=5e-4), \
        float(jnp.max(jnp.abs(out_f32 - ref_f32)))

    # bf16 MXU-operand path (perf default); reference fed the same bf16 operands,
    # both accumulate in f32.
    out_bf16 = jax.block_until_ready(resnest_conv_block(x, w, gamma, beta, stride=1))
    ref_bf16 = _reference(x, w, gamma, beta, jnp.bfloat16)
    assert jnp.allclose(out_bf16, ref_bf16, atol=2e-3, rtol=2e-3), \
        float(jnp.max(jnp.abs(out_bf16 - ref_bf16)))

    print("KERNEL_OK")
</pallas_src>

<mosaic_0001>
module attributes {stable_mosaic.version = 11 : i64} {
  func.func @_conv_stats_kernel(%arg0: i32, %arg1: memref<1x4x256xf32, #tpu.memory_space<vmem>>, %arg2: memref<9x8x4xf32, #tpu.memory_space<vmem>>, %arg3: memref<9x1x256xf32, #tpu.memory_space<vmem>>, %arg4: memref<1x8x256xf32, #tpu.memory_space<vmem>>, %arg5: memref<1x8x2xf32, #tpu.memory_space<vmem>>) attributes {dimension_semantics = [#tpu.dimension_semantics<parallel>], iteration_bounds = array<i64: 2>, scalar_prefetch = 0 : i64, scratch_operands = 0 : i64, tpu.core_type = #tpu.core_type<tc>, window_params = [{transform_indices = @transform_0, window_bounds = array<i64: 1, 4, 256>}, {pipeline_mode = #tpu.pipeline_mode<synchronous>, transform_indices = @transform_1, window_bounds = array<i64: 9, 8, 4>}, {pipeline_mode = #tpu.pipeline_mode<synchronous>, transform_indices = @transform_2, window_bounds = array<i64: 9, 1, 256>}, {transform_indices = @transform_3, window_bounds = array<i64: 1, 8, 256>}, {transform_indices = @transform_4, window_bounds = array<i64: 1, 8, 2>}]} {
    %c0 = arith.constant 0 : index
    %c0_0 = arith.constant 0 : index
    %c0_1 = arith.constant 0 : index
    %0 = vector.load %arg1[%c0, %c0_0, %c0_1] : memref<1x4x256xf32, #tpu.memory_space<vmem>>, vector<1x4x256xf32>
    %1 = vector.shape_cast %0 : vector<1x4x256xf32> to vector<4x256xf32>
    %cst = arith.constant 0.000000e+00 : f32
    %2 = vector.broadcast %cst : f32 to vector<8x256xf32>
    %c17_i32 = arith.constant 17 : i32
    %3 = tpu.dynamic_rotate %1 by %c17_i32 dim 1 : vector<4x256xf32>, i32 -> vector<4x256xf32>
    %c0_2 = arith.constant 0 : index
    %c0_3 = arith.constant 0 : index
    %c0_4 = arith.constant 0 : index
    %4 = vector.load %arg2[%c0_2, %c0_3, %c0_4] : memref<9x8x4xf32, #tpu.memory_space<vmem>>, vector<1x8x4xf32>
    %5 = vector.shape_cast %4 : vector<1x8x4xf32> to vector<8x4xf32>
    %c0_5 = arith.constant 0 : index
    %c0_6 = arith.constant 0 : index
    %c0_7 = arith.constant 0 : index
    %6 = vector.load %arg3[%c0_5, %c0_6, %c0_7] : memref<9x1x256xf32, #tpu.memory_space<vmem>>, vector<1x1x256xf32>
    %7 = vector.shape_cast %6 : vector<1x1x256xf32> to vector<1x256xf32>
    %8 = vector.broadcast %7 : vector<1x256xf32> to vector<4x256xf32>
    %9 = arith.mulf %3, %8 : vector<4x256xf32>
    %cst_8 = arith.constant dense<0.000000e+00> : vector<8x256xf32>
    %10 = tpu.matmul %5, %9, %cst_8 {dimension_numbers = #tpu.dot_dimension_numbers<[1], [0], [0], [1], [0, 0, 1, 1], [], []>} : vector<8x4xf32>, vector<4x256xf32>, vector<8x256xf32> -> vector<8x256xf32>
    %11 = arith.addf %2, %10 : vector<8x256xf32>
    %c16_i32 = arith.constant 16 : i32
    %12 = tpu.dynamic_rotate %1 by %c16_i32 dim 1 : vector<4x256xf32>, i32 -> vector<4x256xf32>
    %c1 = arith.constant 1 : index
    %c0_9 = arith.constant 0 : index
    %c0_10 = arith.constant 0 : index
    %13 = vector.load %arg2[%c1, %c0_9, %c0_10] : memref<9x8x4xf32, #tpu.memory_space<vmem>>, vector<1x8x4xf32>
    %14 = vector.shape_cast %13 : vector<1x8x4xf32> to vector<8x4xf32>
    %c1_11 = arith.constant 1 : index
    %c0_12 = arith.constant 0 : index
    %c0_13 = arith.constant 0 : index
    %15 = vector.load %arg3[%c1_11, %c0_12, %c0_13] : memref<9x1x256xf32, #tpu.memory_space<vmem>>, vector<1x1x256xf32>
    %16 = vector.shape_cast %15 : vector<1x1x256xf32> to vector<1x256xf32>
    %17 = vector.broadcast %16 : vector<1x256xf32> to vector<4x256xf32>
    %18 = arith.mulf %12, %17 : vector<4x256xf32>
    %cst_14 = arith.constant dense<0.000000e+00> : vector<8x256xf32>
    %19 = tpu.matmul %14, %18, %cst_14 {dimension_numbers = #tpu.dot_dimension_numbers<[1], [0], [0], [1], [0, 0, 1, 1], [], []>} : vector<8x4xf32>, vector<4x256xf32>, vector<8x256xf32> -> vector<8x256xf32>
    %20 = arith.addf %11, %19 : vector<8x256xf32>
    %c15_i32 = arith.constant 15 : i32
    %21 = tpu.dynamic_rotate %1 by %c15_i32 dim 1 : vector<4x256xf32>, i32 -> vector<4x256xf32>
    %c2 = arith.constant 2 : index
    %c0_15 = arith.constant 0 : index
    %c0_16 = arith.constant 0 : index
    %22 = vector.load %arg2[%c2, %c0_15, %c0_16] : memref<9x8x4xf32, #tpu.memory_space<vmem>>, vector<1x8x4xf32>
    %23 = vector.shape_cast %22 : vector<1x8x4xf32> to vector<8x4xf32>
    %c2_17 = arith.constant 2 : index
    %c0_18 = arith.constant 0 : index
    %c0_19 = arith.constant 0 : index
    %24 = vector.load %arg3[%c2_17, %c0_18, %c0_19] : memref<9x1x256xf32, #tpu.memory_space<vmem>>, vector<1x1x256xf32>
    %25 = vector.shape_cast %24 : vector<1x1x256xf32> to vector<1x256xf32>
    %26 = vector.broadcast %25 : vector<1x256xf32> to vector<4x256xf32>
    %27 = arith.mulf %21, %26 : vector<4x256xf32>
    %cst_20 = arith.constant dense<0.000000e+00> : vector<8x256xf32>
    %28 = tpu.matmul %23, %27, %cst_20 {dimension_numbers = #tpu.dot_dimension_numbers<[1], [0], [0], [1], [0, 0, 1, 1], [], []>} : vector<8x4xf32>, vector<4x256xf32>, vector<8x256xf32> -> vector<8x256xf32>
    %29 = arith.addf %20, %28 : vector<8x256xf32>
    %c1_i32 = arith.constant 1 : i32
    %30 = tpu.dynamic_rotate %1 by %c1_i32 dim 1 : vector<4x256xf32>, i32 -> vector<4x256xf32>
    %c3 = arith.constant 3 : index
    %c0_21 = arith.constant 0 : index
    %c0_22 = arith.constant 0 : index
    %31 = vector.load %arg2[%c3, %c0_21, %c0_22] : memref<9x8x4xf32, #tpu.memory_space<vmem>>, vector<1x8x4xf32>
    %32 = vector.shape_cast %31 : vector<1x8x4xf32> to vector<8x4xf32>
    %c3_23 = arith.constant 3 : index
    %c0_24 = arith.constant 0 : index
    %c0_25 = arith.constant 0 : index
    %33 = vector.load %arg3[%c3_23, %c0_24, %c0_25] : memref<9x1x256xf32, #tpu.memory_space<vmem>>, vector<1x1x256xf32>
    %34 = vector.shape_cast %33 : vector<1x1x256xf32> to vector<1x256xf32>
    %35 = vector.broadcast %34 : vector<1x256xf32> to vector<4x256xf32>
    %36 = arith.mulf %30, %35 : vector<4x256xf32>
    %cst_26 = arith.constant dense<0.000000e+00> : vector<8x256xf32>
    %37 = tpu.matmul %32, %36, %cst_26 {dimension_numbers = #tpu.dot_dimension_numbers<[1], [0], [0], [1], [0, 0, 1, 1], [], []>} : vector<8x4xf32>, vector<4x256xf32>, vector<8x256xf32> -> vector<8x256xf32>
    %38 = arith.addf %29, %37 : vector<8x256xf32>
    %c4 = arith.constant 4 : index
    %c0_27 = arith.constant 0 : index
    %c0_28 = arith.constant 0 : index
    %39 = vector.load %arg2[%c4, %c0_27, %c0_28] : memref<9x8x4xf32, #tpu.memory_space<vmem>>, vector<1x8x4xf32>
    %40 = vector.shape_cast %39 : vector<1x8x4xf32> to vector<8x4xf32>
    %c4_29 = arith.constant 4 : index
    %c0_30 = arith.constant 0 : index
    %c0_31 = arith.constant 0 : index
    %41 = vector.load %arg3[%c4_29, %c0_30, %c0_31] : memref<9x1x256xf32, #tpu.memory_space<vmem>>, vector<1x1x256xf32>
    %42 = vector.shape_cast %41 : vector<1x1x256xf32> to vector<1x256xf32>
    %43 = vector.broadcast %42 : vector<1x256xf32> to vector<4x256xf32>
    %44 = arith.mulf %1, %43 : vector<4x256xf32>
    %cst_32 = arith.constant dense<0.000000e+00> : vector<8x256xf32>
    %45 = tpu.matmul %40, %44, %cst_32 {dimension_numbers = #tpu.dot_dimension_numbers<[1], [0], [0], [1], [0, 0, 1, 1], [], []>} : vector<8x4xf32>, vector<4x256xf32>, vector<8x256xf32> -> vector<8x256xf32>
    %46 = arith.addf %38, %45 : vector<8x256xf32>
    %c255_i32 = arith.constant 255 : i32
    %47 = tpu.dynamic_rotate %1 by %c255_i32 dim 1 : vector<4x256xf32>, i32 -> vector<4x256xf32>
    %c5 = arith.constant 5 : index
    %c0_33 = arith.constant 0 : index
    %c0_34 = arith.constant 0 : index
    %48 = vector.load %arg2[%c5, %c0_33, %c0_34] : memref<9x8x4xf32, #tpu.memory_space<vmem>>, vector<1x8x4xf32>
    %49 = vector.shape_cast %48 : vector<1x8x4xf32> to vector<8x4xf32>
    %c5_35 = arith.constant 5 : index
    %c0_36 = arith.constant 0 : index
    %c0_37 = arith.constant 0 : index
    %50 = vector.load %arg3[%c5_35, %c0_36, %c0_37] : memref<9x1x256xf32, #tpu.memory_space<vmem>>, vector<1x1x256xf32>
    %51 = vector.shape_cast %50 : vector<1x1x256xf32> to vector<1x256xf32>
    %52 = vector.broadcast %51 : vector<1x256xf32> to vector<4x256xf32>
    %53 = arith.mulf %47, %52 : vector<4x256xf32>
    %cst_38 = arith.constant dense<0.000000e+00> : vector<8x256xf32>
    %54 = tpu.matmul %49, %53, %cst_38 {dimension_numbers = #tpu.dot_dimension_numbers<[1], [0], [0], [1], [0, 0, 1, 1], [], []>} : vector<8x4xf32>, vector<4x256xf32>, vector<8x256xf32> -> vector<8x256xf32>
    %55 = arith.addf %46, %54 : vector<8x256xf32>
    %c241_i32 = arith.constant 241 : i32
    %56 = tpu.dynamic_rotate %1 by %c241_i32 dim 1 : vector<4x256xf32>, i32 -> vector<4x256xf32>
    %c6 = arith.constant 6 : index
    %c0_39 = arith.constant 0 : index
    %c0_40 = arith.constant 0 : index
    %57 = vector.load %arg2[%c6, %c0_39, %c0_40] : memref<9x8x4xf32, #tpu.memory_space<vmem>>, vector<1x8x4xf32>
    %58 = vector.shape_cast %57 : vector<1x8x4xf32> to vector<8x4xf32>
    %c6_41 = arith.constant 6 : index
    %c0_42 = arith.constant 0 : index
    %c0_43 = arith.constant 0 : index
    %59 = vector.load %arg3[%c6_41, %c0_42, %c0_43] : memref<9x1x256xf32, #tpu.memory_space<vmem>>, vector<1x1x256xf32>
    %60 = vector.shape_cast %59 : vector<1x1x256xf32> to vector<1x256xf32>
    %61 = vector.broadcast %60 : vector<1x256xf32> to vector<4x256xf32>
    %62 = arith.mulf %56, %61 : vector<4x256xf32>
    %cst_44 = arith.constant dense<0.000000e+00> : vector<8x256xf32>
    %63 = tpu.matmul %58, %62, %cst_44 {dimension_numbers = #tpu.dot_dimension_numbers<[1], [0], [0], [1], [0, 0, 1, 1], [], []>} : vector<8x4xf32>, vector<4x256xf32>, vector<8x256xf32> -> vector<8x256xf32>
    %64 = arith.addf %55, %63 : vector<8x256xf32>
    %c240_i32 = arith.constant 240 : i32
    %65 = tpu.dynamic_rotate %1 by %c240_i32 dim 1 : vector<4x256xf32>, i32 -> vector<4x256xf32>
    %c7 = arith.constant 7 : index
    %c0_45 = arith.constant 0 : index
    %c0_46 = arith.constant 0 : index
    %66 = vector.load %arg2[%c7, %c0_45, %c0_46] : memref<9x8x4xf32, #tpu.memory_space<vmem>>, vector<1x8x4xf32>
    %67 = vector.shape_cast %66 : vector<1x8x4xf32> to vector<8x4xf32>
    %c7_47 = arith.constant 7 : index
    %c0_48 = arith.constant 0 : index
    %c0_49 = arith.constant 0 : index
    %68 = vector.load %arg3[%c7_47, %c0_48, %c0_49] : memref<9x1x256xf32, #tpu.memory_space<vmem>>, vector<1x1x256xf32>
    %69 = vector.shape_cast %68 : vector<1x1x256xf32> to vector<1x256xf32>
    %70 = vector.broadcast %69 : vector<1x256xf32> to vector<4x256xf32>
    %71 = arith.mulf %65, %70 : vector<4x256xf32>
    %cst_50 = arith.constant dense<0.000000e+00> : vector<8x256xf32>
    %72 = tpu.matmul %67, %71, %cst_50 {dimension_numbers = #tpu.dot_dimension_numbers<[1], [0], [0], [1], [0, 0, 1, 1], [], []>} : vector<8x4xf32>, vector<4x256xf32>, vector<8x256xf32> -> vector<8x256xf32>
    %73 = arith.addf %64, %72 : vector<8x256xf32>
    %c239_i32 = arith.constant 239 : i32
    %74 = tpu.dynamic_rotate %1 by %c239_i32 dim 1 : vector<4x256xf32>, i32 -> vector<4x256xf32>
    %c8 = arith.constant 8 : index
    %c0_51 = arith.constant 0 : index
    %c0_52 = arith.constant 0 : index
    %75 = vector.load %arg2[%c8, %c0_51, %c0_52] : memref<9x8x4xf32, #tpu.memory_space<vmem>>, vector<1x8x4xf32>
    %76 = vector.shape_cast %75 : vector<1x8x4xf32> to vector<8x4xf32>
    %c8_53 = arith.constant 8 : index
    %c0_54 = arith.constant 0 : index
    %c0_55 = arith.constant 0 : index
    %77 = vector.load %arg3[%c8_53, %c0_54, %c0_55] : memref<9x1x256xf32, #tpu.memory_space<vmem>>, vector<1x1x256xf32>
    %78 = vector.shape_cast %77 : vector<1x1x256xf32> to vector<1x256xf32>
    %79 = vector.broadcast %78 : vector<1x256xf32> to vector<4x256xf32>
    %80 = arith.mulf %74, %79 : vector<4x256xf32>
    %cst_56 = arith.constant dense<0.000000e+00> : vector<8x256xf32>
    %81 = tpu.matmul %76, %80, %cst_56 {dimension_numbers = #tpu.dot_dimension_numbers<[1], [0], [0], [1], [0, 0, 1, 1], [], []>} : vector<8x4xf32>, vector<4x256xf32>, vector<8x256xf32> -> vector<8x256xf32>
    %82 = arith.addf %73, %81 : vector<8x256xf32>
    %c0_57 = arith.constant 0 : index
    %c0_58 = arith.constant 0 : index
    %c0_59 = arith.constant 0 : index
    %83 = vector.load %arg4[%c0_57, %c0_58, %c0_59] : memref<1x8x256xf32, #tpu.memory_space<vmem>>, vector<1x8x256xf32>
    %84 = vector.shape_cast %83 : vector<1x8x256xf32> to vector<8x256xf32>
    %85 = vector.shape_cast %82 : vector<8x256xf32> to vector<1x8x256xf32>
    tpu.vector_store %arg4[%c0_57, %c0_58, %c0_59], %85 {strides = array<i32>} : memref<1x8x256xf32, #tpu.memory_space<vmem>>, vector<1x8x256xf32>,
    %cst_60 = arith.constant dense<0.000000e+00> : vector<8xf32>
    %86 = vector.multi_reduction <add>, %82, %cst_60 [1] : vector<8x256xf32> to vector<8xf32>
    %87 = vector.shape_cast %86 : vector<8xf32> to vector<8x1xf32>
    %c0_61 = arith.constant 0 : index
    %c0_62 = arith.constant 0 : index
    %c0_63 = arith.constant 0 : index
    %88 = vector.load %arg5[%c0_61, %c0_62, %c0_63] : memref<1x8x2xf32, #tpu.memory_space<vmem>>, vector<1x8x1xf32>
    %89 = vector.shape_cast %88 : vector<1x8x1xf32> to vector<8x1xf32>
    %90 = vector.shape_cast %87 : vector<8x1xf32> to vector<1x8x1xf32>
    tpu.vector_store %arg5[%c0_61, %c0_62, %c0_63], %90 {strides = array<i32>} : memref<1x8x2xf32, #tpu.memory_space<vmem>>, vector<1x8x1xf32>,
    %91 = arith.mulf %82, %82 : vector<8x256xf32>
    %cst_64 = arith.constant dense<0.000000e+00> : vector<8xf32>
    %92 = vector.multi_reduction <add>, %91, %cst_64 [1] : vector<8x256xf32> to vector<8xf32>
    %93 = vector.shape_cast %92 : vector<8xf32> to vector<8x1xf32>
    %c0_65 = arith.constant 0 : index
    %c0_66 = arith.constant 0 : index
    %c1_67 = arith.constant 1 : index
    %94 = vector.load %arg5[%c0_65, %c0_66, %c1_67] : memref<1x8x2xf32, #tpu.memory_space<vmem>>, vector<1x8x1xf32>
    %95 = vector.shape_cast %94 : vector<1x8x1xf32> to vector<8x1xf32>
    %96 = vector.shape_cast %93 : vector<8x1xf32> to vector<1x8x1xf32>
    tpu.vector_store %arg5[%c0_65, %c0_66, %c1_67], %96 {strides = array<i32>} : memref<1x8x2xf32, #tpu.memory_space<vmem>>, vector<1x8x1xf32>,
    return
  }
  func.func @transform_0(%arg0: i32) -> (i32, i32, i32) {
    %c0_i32 = arith.constant 0 : i32
    %c0_i32_0 = arith.constant 0 : i32
    %c0_i32_1 = arith.constant 0 : i32
    return %arg0, %c0_i32, %c0_i32_0 : i32, i32, i32
  }
  func.func @transform_1(%arg0: i32) -> (i32, i32, i32) {
    %c0_i32 = arith.constant 0 : i32
    %c0_i32_0 = arith.constant 0 : i32
    %c0_i32_1 = arith.constant 0 : i32
    %c0_i32_2 = arith.constant 0 : i32
    return %c0_i32, %c0_i32_0, %c0_i32_1 : i32, i32, i32
  }
  func.func @transform_2(%arg0: i32) -> (i32, i32, i32) {
    %c0_i32 = arith.constant 0 : i32
    %c0_i32_0 = arith.constant 0 : i32
    %c0_i32_1 = arith.constant 0 : i32
    %c0_i32_2 = arith.constant 0 : i32
    return %c0_i32, %c0_i32_0, %c0_i32_1 : i32, i32, i32
  }
  func.func @transform_3(%arg0: i32) -> (i32, i32, i32) {
    %c0_i32 = arith.constant 0 : i32
    %c0_i32_0 = arith.constant 0 : i32
    %c0_i32_1 = arith.constant 0 : i32
    return %arg0, %c0_i32, %c0_i32_0 : i32, i32, i32
  }
  func.func @transform_4(%arg0: i32) -> (i32, i32, i32) {
    %c0_i32 = arith.constant 0 : i32
    %c0_i32_0 = arith.constant 0 : i32
    %c0_i32_1 = arith.constant 0 : i32
    return %arg0, %c0_i32, %c0_i32_0 : i32, i32, i32
  }
}

module attributes {stable_mosaic.version = 11 : i64} {
  func.func @_bn_relu_kernel(%arg0: i32, %arg1: memref<1x8x256xf32, #tpu.memory_space<vmem>>, %arg2: memref<8x2xf32, #tpu.memory_space<vmem>>, %arg3: memref<1x8x256xf32, #tpu.memory_space<vmem>>) attributes {dimension_semantics = [#tpu.dimension_semantics<parallel>], iteration_bounds = array<i64: 2>, scalar_prefetch = 0 : i64, scratch_operands = 0 : i64, tpu.core_type = #tpu.core_type<tc>, window_params = [{transform_indices = @transform_0, window_bounds = array<i64: 1, 8, 256>}, {pipeline_mode = #tpu.pipeline_mode<synchronous>, transform_indices = @transform_1, window_bounds = array<i64: 8, 2>}, {transform_indices = @transform_2, window_bounds = array<i64: 1, 8, 256>}]} {
    %c0 = arith.constant 0 : index
    %c0_0 = arith.constant 0 : index
    %0 = vector.load %arg2[%c0, %c0_0] : memref<8x2xf32, #tpu.memory_space<vmem>>, vector<8x1xf32>
    %c0_1 = arith.constant 0 : index
    %c1 = arith.constant 1 : index
    %1 = vector.load %arg2[%c0_1, %c1] : memref<8x2xf32, #tpu.memory_space<vmem>>, vector<8x1xf32>
    %c0_2 = arith.constant 0 : index
    %c0_3 = arith.constant 0 : index
    %c0_4 = arith.constant 0 : index
    %2 = vector.load %arg1[%c0_2, %c0_3, %c0_4] : memref<1x8x256xf32, #tpu.memory_space<vmem>>, vector<1x8x256xf32>
    %3 = vector.shape_cast %2 : vector<1x8x256xf32> to vector<8x256xf32>
    %4 = vector.broadcast %0 : vector<8x1xf32> to vector<8x256xf32>
    %5 = arith.mulf %3, %4 : vector<8x256xf32>
    %6 = vector.broadcast %1 : vector<8x1xf32> to vector<8x256xf32>
    %7 = arith.addf %5, %6 : vector<8x256xf32>
    %cst = arith.constant 0.000000e+00 : f32
    %8 = vector.broadcast %cst : f32 to vector<8x256xf32>
    %9 = arith.maximumf %7, %8 : vector<8x256xf32>
    %c0_5 = arith.constant 0 : index
    %c0_6 = arith.constant 0 : index
    %c0_7 = arith.constant 0 : index
    %10 = vector.load %arg3[%c0_5, %c0_6, %c0_7] : memref<1x8x256xf32, #tpu.memory_space<vmem>>, vector<1x8x256xf32>
    %11 = vector.shape_cast %10 : vector<1x8x256xf32> to vector<8x256xf32>
    %12 = vector.shape_cast %9 : vector<8x256xf32> to vector<1x8x256xf32>
    tpu.vector_store %arg3[%c0_5, %c0_6, %c0_7], %12 {strides = array<i32>} : memref<1x8x256xf32, #tpu.memory_space<vmem>>, vector<1x8x256xf32>,
    return
  }
  func.func @transform_0(%arg0: i32) -> (i32, i32, i32) {
    %c0_i32 = arith.constant 0 : i32
    %c0_i32_0 = arith.constant 0 : i32
    %c0_i32_1 = arith.constant 0 : i32
    return %arg0, %c0_i32, %c0_i32_0 : i32, i32, i32
  }
  func.func @transform_1(%arg0: i32) -> (i32, i32) {
    %c0_i32 = arith.constant 0 : i32
    %c0_i32_0 = arith.constant 0 : i32
    %c0_i32_1 = arith.constant 0 : i32
    return %c0_i32, %c0_i32_0 : i32, i32
  }
  func.func @transform_2(%arg0: i32) -> (i32, i32, i32) {
    %c0_i32 = arith.constant 0 : i32
    %c0_i32_0 = arith.constant 0 : i32
    %c0_i32_1 = arith.constant 0 : i32
    return %arg0, %c0_i32, %c0_i32_0 : i32, i32, i32
  }
}

</mosaic_0001>

<llo_original>
// kernel: resnest_conv_block.3
$region0: #{resnest_conv_block.3}
  #allocation0 [shape = 'u32[]', space=smem, size = 0x4, offset = 0x4, fixed_abs, tag = 'smem constant byte address 0x4 - core index']
  #allocation1 [shape = 'u32[144,128]{1,0:T(1,128)}', space=vmem, size = 0x12000, scoped, tag = 'internal scratch']
  %s0 = inlined_call_operand.hbm [shape: f32[2,8,256], index: 0, kind: input, shape index: {}, may-alias: {0,2}]
  %s1 = inlined_call_operand.hbm [shape: f32[8,2], index: 1, kind: input, shape index: {}]
  %s2 = inlined_call_operand.hbm [shape: f32[2,8,256], index: 2, kind: output, shape index: {}, may-alias: {0,2}]
  %s3 = sld [smem:[#allocation0]]
  $region49: #{resnest_conv_block.3} parent=0
    _
  %s5 = ssub.s32 1, %s3
  %s6 = scalar_select 0, %s5, %s3
  $region1: #{resnest_conv_block.3} parent=0
    #allocation2 [shape = 'u8[16384]{0}', space=vmem, size = 0x4000, scoped, tag = 'input window, operand 0']
    #allocation3 [shape = 's32[2]{0}', space=sflag, size = 0x8, scoped, tag = 'scoped memory for resnest_conv_block.3']
    #allocation4 [shape = 's32[2]{0}', space=sflag, size = 0x8, scoped, tag = 'scoped memory for resnest_conv_block.3']
    #allocation5 [shape = 'u8[4096]{0}', space=vmem, size = 0x1000, scoped, tag = 'input window, operand 1, single buffered']
    #allocation6 [shape = 's32[1]{0}', space=sflag, size = 0x4, scoped, tag = 'scoped memory for resnest_conv_block.3']
    #allocation7 [shape = 'u8[16384]{0}', space=vmem, size = 0x4000, scoped, tag = 'output window, operand 0']
    %7 = vsyncpa [#allocation3], 0
    %s8 = scalar_lea.sflag [#allocation3], 1
    %9 = vsyncpa %s8, 0
    %10 = vsyncpa [#allocation6], 0
    %11 = vsyncpa [#allocation4], 0
    %s12 = scalar_lea.sflag [#allocation4], 1
    %13 = vsyncpa %s12, 0
    loop: start=0, step=1, limit=4
    $region2: #{resnest_conv_block.3} parent=1 // loop_pre_header
      _
    $region3: #{resnest_conv_block.3} parent=1 // loop_header
      %s15 = sphi 0, %s19
      %p16 = scmp.ge.s32.totalorder %s15, 4
      %s25 = sphi 0, %s27
      %s28 = sphi 0, %s25
      %s29 = sphi 0, %s28
      %s45 = sphi 0, %s29
      %s49 = sphi 0, %s49
      %s51 = sphi 0, %s49
      %s52 = sphi 0, %s51
      %s66 = sphi 0, %s52
      %s72 = sphi 0, %s74
      %s75 = sphi 0, %s72
      %s76 = sphi 0, %s75
      %s92 = sphi 0, %s76
    $region4: #{resnest_conv_block.3} parent=1 // loop_header_branch
      %18 = sbr.rel (%p16) target = $region8
    $region5: #{resnest_conv_block.3} parent=1 // loop_body
      %s20 = ssub.s32 %s15, 1
      %s21 = ssub.s32 %s15, 2
      %s22 = sadd.s32 %s15, 1
      %s23 = ssub.s32 %s15, %s22
      %p24 = scmp.eq.s32.totalorder %s23, 0
      %s26 = sadd.s32 %s25, 1
      %s27 = scalar_select %p24, %s25, %s26
      %p30 = pneg %p24
      %p31 = scmp.eq.s32.totalorder %s15, 1
      %p32 = por %p30, %p31
      %p33 = scmp.ne.s32.totalorder %s25, %s28
      %p34 = scmp.eq.s32.totalorder %s15, 0
      %p35 = por %p33, %p34
      %p36 = scmp.ne.s32.totalorder %s25, %s28
      %p37 = scmp.eq.s32.totalorder %s20, 1
      %p38 = por %p36, %p37
      %p39 = scmp.ne.s32.totalorder %s28, %s29
      %p40 = scmp.eq.s32.totalorder %s20, 0
      %p41 = por %p39, %p40
      %p42 = scmp.ne.s32.totalorder %s28, %s29
      %p43 = scmp.eq.s32.totalorder %s21, 1
      %p44 = por %p42, %p43
      %p46 = scmp.ne.s32.totalorder %s29, %s45
      %p47 = scmp.eq.s32.totalorder %s21, 0
      %p48 = por %p46, %p47
      %s50 = sadd.s32 %s49, 1
      %p53 = scmp.eq.s32.totalorder %s15, 1
      %p54 = scmp.ne.s32.totalorder %s49, %s51
      %p55 = scmp.eq.s32.totalorder %s15, 0
      %p56 = por %p54, %p55
      %p57 = scmp.ne.s32.totalorder %s49, %s51
      %p58 = scmp.eq.s32.totalorder %s20, 1
      %p59 = por %p57, %p58
      %p60 = scmp.ne.s32.totalorder %s51, %s52
      %p61 = scmp.eq.s32.totalorder %s20, 0
      %p62 = por %p60, %p61
      %p63 = scmp.ne.s32.totalorder %s51, %s52
      %p64 = scmp.eq.s32.totalorder %s21, 1
      %p65 = por %p63, %p64
      %p67 = scmp.ne.s32.totalorder %s52, %s66
      %p68 = scmp.eq.s32.totalorder %s21, 0
      %p69 = por %p67, %p68
      %s70 = ssub.s32 %s15, %s22
      %p71 = scmp.eq.s32.totalorder %s70, 0
      %s73 = sadd.s32 %s72, 1
      %s74 = scalar_select %p71, %s72, %s73
      %p77 = pneg %p71
      %p78 = scmp.eq.s32.totalorder %s15, 1
      %p79 = por %p77, %p78
      %p80 = scmp.ne.s32.totalorder %s72, %s75
      %p81 = scmp.eq.s32.totalorder %s15, 0
      %p82 = por %p80, %p81
      %p83 = scmp.ne.s32.totalorder %s72, %s75
      %p84 = scmp.eq.s32.totalorder %s20, 1
      %p85 = por %p83, %p84
      %p86 = scmp.ne.s32.totalorder %s75, %s76
      %p87 = scmp.eq.s32.totalorder %s20, 0
      %p88 = por %p86, %p87
      %p89 = scmp.ne.s32.totalorder %s75, %s76
      %p90 = scmp.eq.s32.totalorder %s21, 1
      %p91 = por %p89, %p90
      %p93 = scmp.ne.s32.totalorder %s76, %s92
      %p94 = scmp.eq.s32.totalorder %s21, 0
      %p95 = por %p93, %p94
      %p96 = scmp.le.s32.totalorder 1, %s15
      %p97 = scmp.lt.s32.totalorder %s15, 3
      %p98 = pnand %p96, %p97
      %p99 = pneg %p98
      // Predicated region
      $region9: #{resnest_conv_block.3} parent=5 // pred_check
        _
      $region10: #{resnest_conv_block.3} parent=5 // pred_check_branch
        %101 = sbr.rel (%p98) target = $region12
      $region11: #{resnest_conv_block.3} parent=5 // pred_region
        %s102 = ssub.s32 %s15, 1
        // Predicated region
        $region13: #{resnest_conv_block.3} parent=11 // pred_check
          %p103 = pneg %p62
        $region14: #{resnest_conv_block.3} parent=11 // pred_check_branch
          %105 = sbr.rel (%p103) target = $region16
        $region15: #{resnest_conv_block.3} parent=11 // pred_region
          %s107 = ssub.s32 128, 128
          %108 = vsyncadd [#allocation6], %s107
          %s110 = sshll.u32 [#allocation5], 4
          %s111 = int_to_ptr.vmem [resolvable:$true] %s110
          %113 = dma.hbm_to_vmem [thread:$0]  %s1, 128, %s111, [#allocation6]
        $region16: #{resnest_conv_block.3} parent=11 // pred_fallthru
          _
      $region12: #{resnest_conv_block.3} parent=5 // pred_fallthru
        _
      %p114 = scmp.lt.s32.totalorder %s15, 2
      // Predicated region
      $region17: #{resnest_conv_block.3} parent=5 // pred_check
        %p115 = pneg %p114
      $region18: #{resnest_conv_block.3} parent=5 // pred_check_branch
        %117 = sbr.rel (%p115) target = $region20
      $region19: #{resnest_conv_block.3} parent=5 // pred_region
        // Predicated region
        $region21: #{resnest_conv_block.3} parent=19 // pred_check
          %p118 = pneg %p35
        $region22: #{resnest_conv_block.3} parent=19 // pred_check_branch
          %120 = sbr.rel (%p118) target = $region24
        $region23: #{resnest_conv_block.3} parent=19 // pred_region
          %s121 = sand.u32 %s25, 1
          %s122 = scalar_lea.sflag [#allocation3], %s121
          %s123 = sand.u32 %s25, 1
          %s124 = smul.addr %s123, 16
          %s125 = scalar_lea.vmem [#allocation2], %s124
          %s127 = ssub.s32 256, 256
          %128 = vsyncadd %s122, %s127
          %s129 = smul.addr %s15, 2
          %s130 = smul.addr %s129, 128
          %s131 = scalar_lea.hbm %s0, %s130
          %s133 = sshll.u32 %s125, 4
          %s134 = int_to_ptr.vmem [resolvable:$true] %s133
          %136 = dma.hbm_to_vmem [thread:$0]  %s131, 256, %s134, %s122
        $region24: #{resnest_conv_block.3} parent=19 // pred_fallthru
          _
      $region20: #{resnest_conv_block.3} parent=5 // pred_fallthru
        _
      %p137 = scmp.le.s32.totalorder 1, %s15
      %p138 = scmp.lt.s32.totalorder %s15, 3
      %p139 = pnand %p137, %p138
      %p140 = pneg %p139
      // Predicated region
      $region25: #{resnest_conv_block.3} parent=5 // pred_check
        _
      $region26: #{resnest_conv_block.3} parent=5 // pred_check_branch
        %142 = sbr.rel (%p139) target = $region28
      $region27: #{resnest_conv_block.3} parent=5 // pred_region
        %s143 = ssub.s32 %s15, 1
        %s144 = sand.u32 %s28, 1
        %s145 = scalar_lea.sflag [#allocation3], %s144
        %s146 = sand.u32 %s28, 1
        %s147 = smul.addr %s146, 16
        %s148 = scalar_lea.vmem [#allocation2], %s147
        // Predicated region
        $region29: #{resnest_conv_block.3} parent=27 // pred_check
          %p149 = pneg %p41
        $region30: #{resnest_conv_block.3} parent=27 // pred_check_branch
          %151 = sbr.rel (%p149) target = $region32
        $region31: #{resnest_conv_block.3} parent=27 // pred_region
          %152 = dma.done %s145, 256
        $region32: #{resnest_conv_block.3} parent=27 // pred_fallthru
          _
        // Predicated region
        $region33: #{resnest_conv_block.3} parent=27 // pred_check
          %p153 = pneg %p62
        $region34: #{resnest_conv_block.3} parent=27 // pred_check_branch
          %155 = sbr.rel (%p153) target = $region36
        $region35: #{resnest_conv_block.3} parent=27 // pred_region
          %156 = dma.done [#allocation6], 128
        $region36: #{resnest_conv_block.3} parent=27 // pred_fallthru
          _
        %s157 = sand.u32 %s28, 1
        %s158 = scalar_lea.sflag [#allocation3], %s157
        %s159 = sand.u32 %s28, 1
        %s160 = smul.addr %s159, 16
        %s161 = scalar_lea.vmem [#allocation2], %s160
        %p162 = pneg %p41
        %p163 = pneg %p38
        %p164 = pneg %p62
        %p165 = pneg %p59
        %p166 = pneg %p88
        %p167 = pneg %p85
        %s168 = sand.u32 %s75, 1
        %s169 = scalar_lea.sflag [#allocation4], %s168
        %s170 = sand.u32 %s75, 1
        %s171 = smul.addr %s170, 16
        %s172 = scalar_lea.vmem [#allocation7], %s171
        %v173 = vld [vmem:[#allocation5] sm:$0xff]
        %v174 = vld [vmem:[%s148] sm:$0xff]
        %v175 = vld [vmem:[%s148 + $0x8] sm:$0xff]
        %177 = vset.pattern.permute.xlu0 0
        %178 = vperm.xlu0 %177, %v173
        %v179 = vpop.permute.xlu0 %178
        %v181 = vmul.f32 %v174, %v179
        %v182 = vmul.f32 %v175, %v179
        %183 = vset.pattern.permute.xlu0 1
        %184 = vperm.xlu0 %183, %v173
        %v185 = vpop.permute.xlu0 %184
        %v187 = vadd.f32 %v181, %v185
        %v188 = vadd.f32 %v182, %v185
        %v189 = vmax.f32 %v187, 0.0
        %v190 = vmax.f32 %v188, 0.0
        %191 = vst [vmem:[%s172] sm:$0xff] %v189
        %192 = vst [vmem:[%s172 + $0x8] sm:$0xff] %v190
        %s193 = sand.u32 %s75, 1
        %s194 = scalar_lea.sflag [#allocation4], %s193
        %s195 = sand.u32 %s75, 1
        %s196 = smul.addr %s195, 16
        %s197 = scalar_lea.vmem [#allocation7], %s196
        // Predicated region
        $region37: #{resnest_conv_block.3} parent=27 // pred_check
          %p198 = pneg %p85
        $region38: #{resnest_conv_block.3} parent=27 // pred_check_branch
          %200 = sbr.rel (%p198) target = $region40
        $region39: #{resnest_conv_block.3} parent=27 // pred_region
          %s202 = ssub.s32 256, 256
          %203 = vsyncadd %s194, %s202
          %s204 = smul.addr %s20, 2
          %s205 = smul.addr %s204, 128
          %s206 = scalar_lea.hbm %s2, %s205
          %s208 = sshll.u32 %s197, 4
          %s209 = int_to_ptr.vmem [resolvable:$true] %s208
          %211 = dma.vmem_to_hbm [thread:$0]  %s209, 256, %s206, %s194
        $region40: #{resnest_conv_block.3} parent=27 // pred_fallthru
          _
      $region28: #{resnest_conv_block.3} parent=5 // pred_fallthru
        _
      %p212 = scmp.le.s32.totalorder 2, %s15
      // Predicated region
      $region41: #{resnest_conv_block.3} parent=5 // pred_check
        %p213 = pneg %p212
      $region42: #{resnest_conv_block.3} parent=5 // pred_check_branch
        %215 = sbr.rel (%p213) target = $region44
      $region43: #{resnest_conv_block.3} parent=5 // pred_region
        %s216 = ssub.s32 %s15, 2
        // Predicated region
        $region45: #{resnest_conv_block.3} parent=43 // pred_check
          %p217 = pneg %p91
        $region46: #{resnest_conv_block.3} parent=43 // pred_check_branch
          %219 = sbr.rel (%p217) target = $region48
        $region47: #{resnest_conv_block.3} parent=43 // pred_region
          %s220 = sand.u32 %s76, 1
          %s221 = scalar_lea.sflag [#allocation4], %s220
          %s222 = sand.u32 %s76, 1
          %s223 = smul.addr %s222, 16
          %s224 = scalar_lea.vmem [#allocation7], %s223
          %225 = dma.done %s221, 256
        $region48: #{resnest_conv_block.3} parent=43 // pred_fallthru
          _
      $region44: #{resnest_conv_block.3} parent=5 // pred_fallthru
        _
    $region6: #{resnest_conv_block.3} parent=1 // loop_footer
      %s19 = sadd.s32 1, %s15
    $region7: #{resnest_conv_block.3} parent=1 // loop_footer_branch
      %14 = sbr.rel target = $region3
    $region8: #{resnest_conv_block.3} parent=1 // loop_exit
      _
    %226 = vsyncpa [#allocation3], 1
    %s227 = scalar_lea.sflag [#allocation3], 1
    %228 = vsyncpa %s227, 1
    %229 = vsyncpa [#allocation6], 1
    %230 = vsyncpa [#allocation4], 1
    %s231 = scalar_lea.sflag [#allocation4], 1
    %232 = vsyncpa %s231, 1

// kernel: resnest_conv_block.2
$region0: #{resnest_conv_block.2}
  #allocation0 [shape = 'u32[]', space=smem, size = 0x4, offset = 0x4, fixed_abs, tag = 'smem constant byte address 0x4 - core index']
  #allocation1 [shape = 'u32[144,128]{1,0:T(1,128)}', space=vmem, size = 0x12000, scoped, tag = 'internal scratch']
  %s0 = inlined_call_operand.hbm [shape: f32[2,4,256], index: 0, kind: input, shape index: {}]
  %s1 = inlined_call_operand.hbm [shape: f32[9,8,4], index: 1, kind: input, shape index: {}]
  %s2 = inlined_call_operand.hbm [shape: f32[9,1,256], index: 2, kind: input, shape index: {}]
  %s3 = inlined_call_operand.hbm [shape: f32[2,8,256], index: 3, kind: output, shape index: {0}]
  %s4 = inlined_call_operand.hbm [shape: f32[2,8,2], index: 4, kind: output, shape index: {1}]
  %5 = xla_tuple %s3, %s4
  %s6 = sld [smem:[#allocation0]]
  $region65: #{resnest_conv_block.2} parent=0
    _
  %s8 = ssub.s32 1, %s6
  %s9 = scalar_select 0, %s8, %s6
  $region1: #{resnest_conv_block.2} parent=0
    #allocation2 [shape = 'u8[8192]{0}', space=vmem, size = 0x2000, scoped, tag = 'input window, operand 0']
    #allocation3 [shape = 's32[2]{0}', space=sflag, size = 0x8, scoped, tag = 'scoped memory for resnest_conv_block.2']
    #allocation4 [shape = 's32[2]{0}', space=sflag, size = 0x8, scoped, tag = 'scoped memory for resnest_conv_block.2']
    #allocation5 [shape = 'u8[36864]{0}', space=vmem, size = 0x9000, scoped, tag = 'input window, operand 1, single buffered']
    #allocation6 [shape = 's32[1]{0}', space=sflag, size = 0x4, scoped, tag = 'scoped memory for resnest_conv_block.2']
    #allocation7 [shape = 'u8[9216]{0}', space=vmem, size = 0x2400, scoped, tag = 'input window, operand 2, single buffered']
    #allocation8 [shape = 'u8[16384]{0}', space=vmem, size = 0x4000, scoped, tag = 'output window, operand 0']
    #allocation9 [shape = 'u8[8192]{0}', space=vmem, size = 0x2000, scoped, tag = 'output window, operand 1']
    #allocation10 [shape = 's32[2]{0}', space=sflag, size = 0x8, scoped, tag = 'scoped memory for resnest_conv_block.2']
    %10 = vsyncpa [#allocation3], 0
    %s11 = scalar_lea.sflag [#allocation3], 1
    %12 = vsyncpa %s11, 0
    %13 = vsyncpa [#allocation6], 0
    %14 = vsyncpa [#allocation4], 0
    %s15 = scalar_lea.sflag [#allocation4], 1
    %16 = vsyncpa %s15, 0
    %17 = vsyncpa [#allocation10], 0
    %s18 = scalar_lea.sflag [#allocation10], 1
    %19 = vsyncpa %s18, 0
    loop: start=0, step=1, limit=4
    $region2: #{resnest_conv_block.2} parent=1 // loop_pre_header
      _
    $region3: #{resnest_conv_block.2} parent=1 // loop_header
      %s21 = sphi 0, %s25
      %p22 = scmp.ge.s32.totalorder %s21, 4
      %s31 = sphi 0, %s33
      %s34 = sphi 0, %s31
      %s35 = sphi 0, %s34
      %s51 = sphi 0, %s35
      %s55 = sphi 0, %s55
      %s57 = sphi 0, %s55
      %s58 = sphi 0, %s57
      %s72 = sphi 0, %s58
      %s76 = sphi 0, %s76
      %s78 = sphi 0, %s76
      %s79 = sphi 0, %s78
      %s93 = sphi 0, %s79
      %s99 = sphi 0, %s101
      %s102 = sphi 0, %s99
      %s103 = sphi 0, %s102
      %s119 = sphi 0, %s103
      %s125 = sphi 0, %s127
      %s128 = sphi 0, %s125
      %s129 = sphi 0, %s128
      %s145 = sphi 0, %s129
    $region4: #{resnest_conv_block.2} parent=1 // loop_header_branch
      %24 = sbr.rel (%p22) target = $region8
    $region5: #{resnest_conv_block.2} parent=1 // loop_body
      %s26 = ssub.s32 %s21, 1
      %s27 = ssub.s32 %s21, 2
      %s28 = sadd.s32 %s21, 1
      %s29 = ssub.s32 %s21, %s28
      %p30 = scmp.eq.s32.totalorder %s29, 0
      %s32 = sadd.s32 %s31, 1
      %s33 = scalar_select %p30, %s31, %s32
      %p36 = pneg %p30
      %p37 = scmp.eq.s32.totalorder %s21, 1
      %p38 = por %p36, %p37
      %p39 = scmp.ne.s32.totalorder %s31, %s34
      %p40 = scmp.eq.s32.totalorder %s21, 0
      %p41 = por %p39, %p40
      %p42 = scmp.ne.s32.totalorder %s31, %s34
      %p43 = scmp.eq.s32.totalorder %s26, 1
      %p44 = por %p42, %p43
      %p45 = scmp.ne.s32.totalorder %s34, %s35
      %p46 = scmp.eq.s32.totalorder %s26, 0
      %p47 = por %p45, %p46
      %p48 = scmp.ne.s32.totalorder %s34, %s35
      %p49 = scmp.eq.s32.totalorder %s27, 1
      %p50 = por %p48, %p49
      %p52 = scmp.ne.s32.totalorder %s35, %s51
      %p53 = scmp.eq.s32.totalorder %s27, 0
      %p54 = por %p52, %p53
      %s56 = sadd.s32 %s55, 1
      %p59 = scmp.eq.s32.totalorder %s21, 1
      %p60 = scmp.ne.s32.totalorder %s55, %s57
      %p61 = scmp.eq.s32.totalorder %s21, 0
      %p62 = por %p60, %p61
      %p63 = scmp.ne.s32.totalorder %s55, %s57
      %p64 = scmp.eq.s32.totalorder %s26, 1
      %p65 = por %p63, %p64
      %p66 = scmp.ne.s32.totalorder %s57, %s58
      %p67 = scmp.eq.s32.totalorder %s26, 0
      %p68 = por %p66, %p67
      %p69 = scmp.ne.s32.totalorder %s57, %s58
      %p70 = scmp.eq.s32.totalorder %s27, 1
      %p71 = por %p69, %p70
      %p73 = scmp.ne.s32.totalorder %s58, %s72
      %p74 = scmp.eq.s32.totalorder %s27, 0
      %p75 = por %p73, %p74
      %s77 = sadd.s32 %s76, 1
      %p80 = scmp.eq.s32.totalorder %s21, 1
      %p81 = scmp.ne.s32.totalorder %s76, %s78
      %p82 = scmp.eq.s32.totalorder %s21, 0
      %p83 = por %p81, %p82
      %p84 = scmp.ne.s32.totalorder %s76, %s78
      %p85 = scmp.eq.s32.totalorder %s26, 1
      %p86 = por %p84, %p85
      %p87 = scmp.ne.s32.totalorder %s78, %s79
      %p88 = scmp.eq.s32.totalorder %s26, 0
      %p89 = por %p87, %p88
      %p90 = scmp.ne.s32.totalorder %s78, %s79
      %p91 = scmp.eq.s32.totalorder %s27, 1
      %p92 = por %p90, %p91
      %p94 = scmp.ne.s32.totalorder %s79, %s93
      %p95 = scmp.eq.s32.totalorder %s27, 0
      %p96 = por %p94, %p95
      %s97 = ssub.s32 %s21, %s28
      %p98 = scmp.eq.s32.totalorder %s97, 0
      %s100 = sadd.s32 %s99, 1
      %s101 = scalar_select %p98, %s99, %s100
      %p104 = pneg %p98
      %p105 = scmp.eq.s32.totalorder %s21, 1
      %p106 = por %p104, %p105
      %p107 = scmp.ne.s32.totalorder %s99, %s102
      %p108 = scmp.eq.s32.totalorder %s21, 0
      %p109 = por %p107, %p108
      %p110 = scmp.ne.s32.totalorder %s99, %s102
      %p111 = scmp.eq.s32.totalorder %s26, 1
      %p112 = por %p110, %p111
      %p113 = scmp.ne.s32.totalorder %s102, %s103
      %p114 = scmp.eq.s32.totalorder %s26, 0
      %p115 = por %p113, %p114
      %p116 = scmp.ne.s32.totalorder %s102, %s103
      %p117 = scmp.eq.s32.totalorder %s27, 1
      %p118 = por %p116, %p117
      %p120 = scmp.ne.s32.totalorder %s103, %s119
      %p121 = scmp.eq.s32.totalorder %s27, 0
      %p122 = por %p120, %p121
      %s123 = ssub.s32 %s21, %s28
      %p124 = scmp.eq.s32.totalorder %s123, 0
      %s126 = sadd.s32 %s125, 1
      %s127 = scalar_select %p124, %s125, %s126
      %p130 = pneg %p124
      %p131 = scmp.eq.s32.totalorder %s21, 1
      %p132 = por %p130, %p131
      %p133 = scmp.ne.s32.totalorder %s125, %s128
      %p134 = scmp.eq.s32.totalorder %s21, 0
      %p135 = por %p133, %p134
      %p136 = scmp.ne.s32.totalorder %s125, %s128
      %p137 = scmp.eq.s32.totalorder %s26, 1
      %p138 = por %p136, %p137
      %p139 = scmp.ne.s32.totalorder %s128, %s129
      %p140 = scmp.eq.s32.totalorder %s26, 0
      %p141 = por %p139, %p140
      %p142 = scmp.ne.s32.totalorder %s128, %s129
      %p143 = scmp.eq.s32.totalorder %s27, 1
      %p144 = por %p142, %p143
      %p146 = scmp.ne.s32.totalorder %s129, %s145
      %p147 = scmp.eq.s32.totalorder %s27, 0
      %p148 = por %p146, %p147
      %p149 = scmp.le.s32.totalorder 1, %s21
      %p150 = scmp.lt.s32.totalorder %s21, 3
      %p151 = pnand %p149, %p150
      %p152 = pneg %p151
      // Predicated region
      $region9: #{resnest_conv_block.2} parent=5 // pred_check
        _
      $region10: #{resnest_conv_block.2} parent=5 // pred_check_branch
        %154 = sbr.rel (%p151) target = $region12
      $region11: #{resnest_conv_block.2} parent=5 // pred_region
        %s155 = ssub.s32 %s21, 1
        // Predicated region
        $region13: #{resnest_conv_block.2} parent=11 // pred_check
          %p156 = pneg %p68
        $region14: #{resnest_conv_block.2} parent=11 // pred_check_branch
          %158 = sbr.rel (%p156) target = $region16
        $region15: #{resnest_conv_block.2} parent=11 // pred_region
          %s160 = ssub.s32 1152, 1152
          %161 = vsyncadd [#allocation6], %s160
          %s162 = sshll.u32 [#allocation5], 4
          %s163 = int_to_ptr.vmem [resolvable:$true] %s162
          %168 = dma.hbm_to_vmem [thread:$0]  %s1, 1152, %s163, [#allocation6], 128, 128, 8
        $region16: #{resnest_conv_block.2} parent=11 // pred_fallthru
          _
        // Predicated region
        $region17: #{resnest_conv_block.2} parent=11 // pred_check
          %p169 = pneg %p89
        $region18: #{resnest_conv_block.2} parent=11 // pred_check_branch
          %171 = sbr.rel (%p169) target = $region20
        $region19: #{resnest_conv_block.2} parent=11 // pred_region
          %s173 = ssub.s32 288, 288
          %174 = vsyncadd [#allocation6], %s173
          %s175 = sshll.u32 [#allocation7], 4
          %s176 = int_to_ptr.vmem [resolvable:$true] %s175
          %181 = dma.hbm_to_vmem [thread:$0]  %s2, 288, %s176, [#allocation6], 32, 32, 2
        $region20: #{resnest_conv_block.2} parent=11 // pred_fallthru
          _
      $region12: #{resnest_conv_block.2} parent=5 // pred_fallthru
        _
      %p182 = scmp.lt.s32.totalorder %s21, 2
      // Predicated region
      $region21: #{resnest_conv_block.2} parent=5 // pred_check
        %p183 = pneg %p182
      $region22: #{resnest_conv_block.2} parent=5 // pred_check_branch
        %185 = sbr.rel (%p183) target = $region24
      $region23: #{resnest_conv_block.2} parent=5 // pred_region
        // Predicated region
        $region25: #{resnest_conv_block.2} parent=23 // pred_check
          %p186 = pneg %p41
        $region26: #{resnest_conv_block.2} parent=23 // pred_check_branch
          %188 = sbr.rel (%p186) target = $region28
        $region27: #{resnest_conv_block.2} parent=23 // pred_region
          %s189 = sand.u32 %s31, 1
          %s190 = scalar_lea.sflag [#allocation3], %s189
          %s191 = sand.u32 %s31, 1
          %s192 = smul.addr %s191, 8
          %s193 = scalar_lea.vmem [#allocation2], %s192
          %s195 = ssub.s32 128, 128
          %196 = vsyncadd %s190, %s195
          %s197 = smul.addr %s21, 2
          %s198 = smul.addr %s197, 64
          %s199 = scalar_lea.hbm %s0, %s198
          %s201 = sshll.u32 %s193, 4
          %s202 = int_to_ptr.vmem [resolvable:$true] %s201
          %204 = dma.hbm_to_vmem [thread:$0]  %s199, 128, %s202, %s190
        $region28: #{resnest_conv_block.2} parent=23 // pred_fallthru
          _
      $region24: #{resnest_conv_block.2} parent=5 // pred_fallthru
        _
      %p205 = scmp.le.s32.totalorder 1, %s21
      %p206 = scmp.lt.s32.totalorder %s21, 3
      %p207 = pnand %p205, %p206
      %p208 = pneg %p207
      // Predicated region
      $region29: #{resnest_conv_block.2} parent=5 // pred_check
        _
      $region30: #{resnest_conv_block.2} parent=5 // pred_check_branch
        %210 = sbr.rel (%p207) target = $region32
      $region31: #{resnest_conv_block.2} parent=5 // pred_region
        %s211 = ssub.s32 %s21, 1
        %s212 = sand.u32 %s34, 1
        %s213 = scalar_lea.sflag [#allocation3], %s212
        %s214 = sand.u32 %s34, 1
        %s215 = smul.addr %s214, 8
        %s216 = scalar_lea.vmem [#allocation2], %s215
        // Predicated region
        $region33: #{resnest_conv_block.2} parent=31 // pred_check
          %p217 = pneg %p47
        $region34: #{resnest_conv_block.2} parent=31 // pred_check_branch
          %219 = sbr.rel (%p217) target = $region36
        $region35: #{resnest_conv_block.2} parent=31 // pred_region
          %220 = dma.done %s213, 128
        $region36: #{resnest_conv_block.2} parent=31 // pred_fallthru
          _
        // Predicated region
        $region37: #{resnest_conv_block.2} parent=31 // pred_check
          %p221 = pneg %p68
        $region38: #{resnest_conv_block.2} parent=31 // pred_check_branch
          %223 = sbr.rel (%p221) target = $region40
        $region39: #{resnest_conv_block.2} parent=31 // pred_region
          %224 = dma.done [#allocation6], 1152
        $region40: #{resnest_conv_block.2} parent=31 // pred_fallthru
          _
        // Predicated region
        $region41: #{resnest_conv_block.2} parent=31 // pred_check
          %p225 = pneg %p89
        $region42: #{resnest_conv_block.2} parent=31 // pred_check_branch
          %227 = sbr.rel (%p225) target = $region44
        $region43: #{resnest_conv_block.2} parent=31 // pred_region
          %228 = dma.done [#allocation6], 288
        $region44: #{resnest_conv_block.2} parent=31 // pred_fallthru
          _
        %s229 = sand.u32 %s34, 1
        %s230 = scalar_lea.sflag [#allocation3], %s229
        %s231 = sand.u32 %s34, 1
        %s232 = smul.addr %s231, 8
        %s233 = scalar_lea.vmem [#allocation2], %s232
        %p234 = pneg %p47
        %p235 = pneg %p44
        %p236 = pneg %p68
        %p237 = pneg %p65
        %p238 = pneg %p89
        %p239 = pneg %p86
        %p240 = pneg %p115
        %p241 = pneg %p112
        %s242 = sand.u32 %s102, 1
        %s243 = scalar_lea.sflag [#allocation4], %s242
        %s244 = sand.u32 %s102, 1
        %s245 = smul.addr %s244, 16
        %s246 = scalar_lea.vmem [#allocation8], %s245
        %p247 = pneg %p141
        %p248 = pneg %p138
        %s249 = sand.u32 %s128, 1
        %s250 = scalar_lea.sflag [#allocation10], %s249
        %s251 = sand.u32 %s128, 1
        %s252 = smul.addr %s251, 8
        %s253 = scalar_lea.vmem [#allocation9], %s252
        %v254 = vld [vmem:[%s216] sm:$0xff]
        %v256 = vcombine.high %v254, %v254
        %258 = vrot.lane.b32.xlu0 %v254, 17
        %v259 = vpop.permute.xlu0 %258
        %260 = vrot.lane.b32.xlu0 %v256, 17
        %v261 = vpop.permute.xlu0 %260
        %v262 = vlaneseq
        %v263 = vand.u32 %v262, 127
        %vm264 = vcmp.lt.s32.totalorder %v263, 17
        %v265 = vsel %vm264, %v259, %v261
        %v266 = vsel %vm264, %v261, %v259
        %v267 = vld [vmem:[#allocation5] sm:$0xff]
        %v268 = vld [vmem:[#allocation7] sm:$0x3]
        %v270 = vlaneseq
        %v271 = vshrl.u32 %v270, 7
        %v272 = vsub.s32 0, %v271
        %v273 = vrot.slane %v268, %v272
        %v274 = vlaneseq
        %v275 = vshrl.u32 %v274, 7
        %v276 = vsub.s32 1, %v275
        %v277 = vrot.slane %v268, %v276
        %v280 = vmul.f32 %v266, %v273
        %v281 = vmul.f32 %v265, %v277
        %282 = vrot.lane.b32.xlu0 %v254, 16
        %v283 = vpop.permute.xlu0 %282
        %284 = vrot.lane.b32.xlu0 %v256, 16
        %v285 = vpop.permute.xlu0 %284
        %vm286 = vcmp.lt.s32.totalorder %v263, 16
        %v287 = vsel %vm286, %v283, %v285
        %v288 = vsel %vm286, %v285, %v283
        %s289 = scalar_lea.vmem [#allocation5], 8
        %v290 = vld [vmem:[%s289] sm:$0xff]
        %s291 = scalar_lea.vmem [#allocation7], 2
        %v292 = vld [vmem:[%s291] sm:$0x3]
        %v294 = vlaneseq
        %v295 = vshrl.u32 %v294, 7
        %v296 = vsub.s32 0, %v295
        %v297 = vrot.slane %v292, %v296
        %v298 = vlaneseq
        %v299 = vshrl.u32 %v298, 7
        %v300 = vsub.s32 1, %v299
        %v301 = vrot.slane %v292, %v300
        %v304 = vmul.f32 %v288, %v297
        %v305 = vmul.f32 %v287, %v301
        %vm306 = vcmask 31744
        %v308 = vsel %vm306, %v290, 0
        %vm310 = vcmask 1043456
        %v312 = vsel %vm310, %v304, 0
        %v315 = vsel %vm310, %v305, 0
        %317 = vmatprep.subr.mxu0 %v315
        %318 = vmatpush1.msra.mxu0 %v312
        %319 = vmatprep.subr.mxu0 0.0
        %320 = vmatpush1.msra.mxu0 0.0
        %321 = vmatprep.subr.mxu0 0.0
        %322 = vmatpush1.msra.mxu0 0.0
        %323 = vmatprep.subr.mxu0 0.0
        %324 = vmatpush1.msra.mxu0 0.0
        %325 = vmatprep.subr.mxu0 0.0
        %326 = vmatpush1.msra.mxu0 0.0
        %327 = vmatprep.subr.mxu0 0.0
        %328 = vmatpush1.msra.mxu0 0.0
        %329 = vmatprep.subr.mxu0 0.0
        %330 = vmatpush1.msra.mxu0 0.0
        %331 = vmatprep.subr.mxu0 0.0
        %332 = vmatpush1.msra.mxu0 0.0
        %333 = vmatprep.subr.mxu0 0.0
        %334 = vmatpush1.msra.mxu0 0.0
        %335 = vmatprep.subr.mxu0 0.0
        %336 = vmatpush1.msra.mxu0 0.0
        %337 = vmatprep.subr.mxu0 0.0
        %338 = vmatpush1.msra.mxu0 0.0
        %339 = vmatprep.subr.mxu0 0.0
        %340 = vmatpush1.msra.mxu0 0.0
        %341 = vmatprep.subr.mxu0 0.0
        %342 = vmatpush1.msra.mxu0 0.0
        %343 = vmatprep.subr.mxu0 0.0
        %344 = vmatpush1.msra.mxu0 0.0
        %345 = vmatprep.subr.mxu0 0.0
        %346 = vmatpush1.msra.mxu0 0.0
        %347 = vmatprep.subr.mxu0 0.0
        %348 = vmatpush1.msra.mxu0 0.0
        %349 = vmatprep.subr.mxu0 0.0
        %350 = vmatpush1.msra.mxu0 0.0
        %351 = vmatprep.subr.mxu0 0.0
        %352 = vmatpush1.msra.mxu0 0.0
        %353 = vmatprep.subr.mxu0 0.0
        %354 = vmatpush1.msra.mxu0 0.0
        %355 = vmatprep.subr.mxu0 0.0
        %356 = vmatpush1.msra.mxu0 0.0
        %357 = vmatprep.subr.mxu0 0.0
        %358 = vmatpush1.msra.mxu0 0.0
        %359 = vmatprep.subr.mxu0 0.0
        %360 = vmatpush1.msra.mxu0 0.0
        %361 = vmatprep.subr.mxu0 0.0
        %362 = vmatpush1.msra.mxu0 0.0
        %363 = vmatprep.subr.mxu0 0.0
        %364 = vmatpush1.msra.mxu0 0.0
        %365 = vmatprep.subr.mxu0 0.0
        %366 = vmatpush1.msra.mxu0 0.0
        %367 = vmatprep.subr.mxu0 0.0
        %368 = vmatpush1.msra.mxu0 0.0
        %369 = vmatprep.subr.mxu0 0.0
        %370 = vmatpush1.msra.mxu0 0.0
        %371 = vmatprep.subr.mxu0 0.0
        %372 = vmatpush1.msra.mxu0 0.0
        %373 = vmatprep.subr.mxu0 0.0
        %374 = vmatpush1.msra.mxu0 0.0
        %375 = vmatprep.subr.mxu0 0.0
        %376 = vmatpush1.msra.mxu0 0.0
        %377 = vmatprep.subr.mxu0 0.0
        %378 = vmatpush1.msra.mxu0 0.0
        %379 = vmatprep.subr.mxu0 0.0
        %380 = vmatpush1.msra.mxu0 0.0
        %381 = vmatprep.mubr.f32.mxu0 0.0
        %382 = vmatmul.mubr.f32.gmra.mrb[0].mxu0 %v308
        %v383 = vpop.f32.mrb[0].mxu0
        %v384 = vadd.f32 0.0, %v383
        %v385 = vpop.f32.mrb[0].mxu0
        %v386 = vadd.f32 0.0, %v385
        %387 = vdwg.mxu0
        %v389 = vsel %vm306, %v267, 0
        %v392 = vsel %vm310, %v280, 0
        %v395 = vsel %vm310, %v281, 0
        %397 = vmatprep.subr.mxu0 %v395
        %398 = vmatpush1.msra.mxu0 %v392
        %399 = vmatprep.subr.mxu0 0.0
        %400 = vmatpush1.msra.mxu0 0.0
        %401 = vmatprep.subr.mxu0 0.0
        %402 = vmatpush1.msra.mxu0 0.0
        %403 = vmatprep.subr.mxu0 0.0
        %404 = vmatpush1.msra.mxu0 0.0
        %405 = vmatprep.subr.mxu0 0.0
        %406 = vmatpush1.msra.mxu0 0.0
        %407 = vmatprep.subr.mxu0 0.0
        %408 = vmatpush1.msra.mxu0 0.0
        %409 = vmatprep.subr.mxu0 0.0
        %410 = vmatpush1.msra.mxu0 0.0
        %411 = vmatprep.subr.mxu0 0.0
        %412 = vmatpush1.msra.mxu0 0.0
        %413 = vmatprep.subr.mxu0 0.0
        %414 = vmatpush1.msra.mxu0 0.0
        %415 = vmatprep.subr.mxu0 0.0
        %416 = vmatpush1.msra.mxu0 0.0
        %417 = vmatprep.subr.mxu0 0.0
        %418 = vmatpush1.msra.mxu0 0.0
        %419 = vmatprep.subr.mxu0 0.0
        %420 = vmatpush1.msra.mxu0 0.0
        %421 = vmatprep.subr.mxu0 0.0
        %422 = vmatpush1.msra.mxu0 0.0
        %423 = vmatprep.subr.mxu0 0.0
        %424 = vmatpush1.msra.mxu0 0.0
        %425 = vmatprep.subr.mxu0 0.0
        %426 = vmatpush1.msra.mxu0 0.0
        %427 = vmatprep.subr.mxu0 0.0
        %428 = vmatpush1.msra.mxu0 0.0
        %429 = vmatprep.subr.mxu0 0.0
        %430 = vmatpush1.msra.mxu0 0.0
        %431 = vmatprep.subr.mxu0 0.0
        %432 = vmatpush1.msra.mxu0 0.0
        %433 = vmatprep.subr.mxu0 0.0
        %434 = vmatpush1.msra.mxu0 0.0
        %435 = vmatprep.subr.mxu0 0.0
        %436 = vmatpush1.msra.mxu0 0.0
        %437 = vmatprep.subr.mxu0 0.0
        %438 = vmatpush1.msra.mxu0 0.0
        %439 = vmatprep.subr.mxu0 0.0
        %440 = vmatpush1.msra.mxu0 0.0
        %441 = vmatprep.subr.mxu0 0.0
        %442 = vmatpush1.msra.mxu0 0.0
        %443 = vmatprep.subr.mxu0 0.0
        %444 = vmatpush1.msra.mxu0 0.0
        %445 = vmatprep.subr.mxu0 0.0
        %446 = vmatpush1.msra.mxu0 0.0
        %447 = vmatprep.subr.mxu0 0.0
        %448 = vmatpush1.msra.mxu0 0.0
        %449 = vmatprep.subr.mxu0 0.0
        %450 = vmatpush1.msra.mxu0 0.0
        %451 = vmatprep.subr.mxu0 0.0
        %452 = vmatpush1.msra.mxu0 0.0
        %453 = vmatprep.subr.mxu0 0.0
        %454 = vmatpush1.msra.mxu0 0.0
        %455 = vmatprep.subr.mxu0 0.0
        %456 = vmatpush1.msra.mxu0 0.0
        %457 = vmatprep.subr.mxu0 0.0
        %458 = vmatpush1.msra.mxu0 0.0
        %459 = vmatprep.subr.mxu0 0.0
        %460 = vmatpush1.msra.mxu0 0.0
        %461 = vmatprep.mubr.f32.mxu0 0.0
        %462 = vmatmul.mubr.f32.gmra.mrb[0].mxu0 %v389
        %v463 = vpop.f32.mrb[0].mxu0
        %v464 = vadd.f32 %v384, %v463
        %v465 = vpop.f32.mrb[0].mxu0
        %v466 = vadd.f32 %v386, %v465
        %467 = vdwg.mxu0
        %468 = vrot.lane.b32.xlu0 %v254, 15
        %v469 = vpop.permute.xlu0 %468
        %470 = vrot.lane.b32.xlu0 %v256, 15
        %v471 = vpop.permute.xlu0 %470
        %vm472 = vcmp.lt.s32.totalorder %v263, 15
        %v473 = vsel %vm472, %v469, %v471
        %v474 = vsel %vm472, %v471, %v469
        %s475 = scalar_lea.vmem [#allocation5], 16
        %v476 = vld [vmem:[%s475] sm:$0xff]
        %s477 = scalar_lea.vmem [#allocation7], 4
        %v478 = vld [vmem:[%s477] sm:$0x3]
        %v480 = vlaneseq
        %v481 = vshrl.u32 %v480, 7
        %v482 = vsub.s32 0, %v481
        %v483 = vrot.slane %v478, %v482
        %v484 = vlaneseq
        %v485 = vshrl.u32 %v484, 7
        %v486 = vsub.s32 1, %v485
        %v487 = vrot.slane %v478, %v486
        %v490 = vmul.f32 %v474, %v483
        %v491 = vmul.f32 %v473, %v487
        %v493 = vsel %vm306, %v476, 0
        %v496 = vsel %vm310, %v490, 0
        %v499 = vsel %vm310, %v491, 0
        %501 = vmatprep.subr.mxu0 %v499
        %502 = vmatpush1.msra.mxu0 %v496
        %503 = vmatprep.subr.mxu0 0.0
        %504 = vmatpush1.msra.mxu0 0.0
        %505 = vmatprep.subr.mxu0 0.0
        %506 = vmatpush1.msra.mxu0 0.0
        %507 = vmatprep.subr.mxu0 0.0
        %508 = vmatpush1.msra.mxu0 0.0
        %509 = vmatprep.subr.mxu0 0.0
        %510 = vmatpush1.msra.mxu0 0.0
        %511 = vmatprep.subr.mxu0 0.0
        %512 = vmatpush1.msra.mxu0 0.0
        %513 = vmatprep.subr.mxu0 0.0
        %514 = vmatpush1.msra.mxu0 0.0
        %515 = vmatprep.subr.mxu0 0.0
        %516 = vmatpush1.msra.mxu0 0.0
        %517 = vmatprep.subr.mxu0 0.0
        %518 = vmatpush1.msra.mxu0 0.0
        %519 = vmatprep.subr.mxu0 0.0
        %520 = vmatpush1.msra.mxu0 0.0
        %521 = vmatprep.subr.mxu0 0.0
        %522 = vmatpush1.msra.mxu0 0.0
        %523 = vmatprep.subr.mxu0 0.0
        %524 = vmatpush1.msra.mxu0 0.0
        %525 = vmatprep.subr.mxu0 0.0
        %526 = vmatpush1.msra.mxu0 0.0
        %527 = vmatprep.subr.mxu0 0.0
        %528 = vmatpush1.msra.mxu0 0.0
        %529 = vmatprep.subr.mxu0 0.0
        %530 = vmatpush1.msra.mxu0 0.0
        %531 = vmatprep.subr.mxu0 0.0
        %532 = vmatpush1.msra.mxu0 0.0
        %533 = vmatprep.subr.mxu0 0.0
        %534 = vmatpush1.msra.mxu0 0.0
        %535 = vmatprep.subr.mxu0 0.0
        %536 = vmatpush1.msra.mxu0 0.0
        %537 = vmatprep.subr.mxu0 0.0
        %538 = vmatpush1.msra.mxu0 0.0
        %539 = vmatprep.subr.mxu0 0.0
        %540 = vmatpush1.msra.mxu0 0.0
        %541 = vmatprep.subr.mxu0 0.0
        %542 = vmatpush1.msra.mxu0 0.0
        %543 = vmatprep.subr.mxu0 0.0
        %544 = vmatpush1.msra.mxu0 0.0
        %545 = vmatprep.subr.mxu0 0.0
        %546 = vmatpush1.msra.mxu0 0.0
        %547 = vmatprep.subr.mxu0 0.0
        %548 = vmatpush1.msra.mxu0 0.0
        %549 = vmatprep.subr.mxu0 0.0
        %550 = vmatpush1.msra.mxu0 0.0
        %551 = vmatprep.subr.mxu0 0.0
        %552 = vmatpush1.msra.mxu0 0.0
        %553 = vmatprep.subr.mxu0 0.0
        %554 = vmatpush1.msra.mxu0 0.0
        %555 = vmatprep.subr.mxu0 0.0
        %556 = vmatpush1.msra.mxu0 0.0
        %557 = vmatprep.subr.mxu0 0.0
        %558 = vmatpush1.msra.mxu0 0.0
        %559 = vmatprep.subr.mxu0 0.0
        %560 = vmatpush1.msra.mxu0 0.0
        %561 = vmatprep.subr.mxu0 0.0
        %562 = vmatpush1.msra.mxu0 0.0
        %563 = vmatprep.subr.mxu0 0.0
        %564 = vmatpush1.msra.mxu0 0.0
        %565 = vmatprep.mubr.f32.mxu0 0.0
        %566 = vmatmul.mubr.f32.gmra.mrb[0].mxu0 %v493
        %v567 = vpop.f32.mrb[0].mxu0
        %v568 = vadd.f32 0.0, %v567
        %v569 = vpop.f32.mrb[0].mxu0
        %v570 = vadd.f32 0.0, %v569
        %571 = vdwg.mxu0
        %v572 = vadd.f32 %v464, %v568
        %v573 = vadd.f32 %v466, %v570
        %574 = vrot.lane.b32.xlu0 %v254, 1
        %v575 = vpop.permute.xlu0 %574
        %576 = vrot.lane.b32.xlu0 %v256, 1
        %v577 = vpop.permute.xlu0 %576
        %vm578 = vcmp.lt.s32.totalorder %v263, 1
        %v579 = vsel %vm578, %v575, %v577
        %v580 = vsel %vm578, %v577, %v575
        %s581 = scalar_lea.vmem [#allocation5], 24
        %v582 = vld [vmem:[%s581] sm:$0xff]
        %s583 = scalar_lea.vmem [#allocation7], 6
        %v584 = vld [vmem:[%s583] sm:$0x3]
        %v586 = vlaneseq
        %v587 = vshrl.u32 %v586, 7
        %v588 = vsub.s32 0, %v587
        %v589 = vrot.slane %v584, %v588
        %v590 = vlaneseq
        %v591 = vshrl.u32 %v590, 7
        %v592 = vsub.s32 1, %v591
        %v593 = vrot.slane %v584, %v592
        %v596 = vmul.f32 %v580, %v589
        %v597 = vmul.f32 %v579, %v593
        %v599 = vsel %vm306, %v582, 0
        %v602 = vsel %vm310, %v596, 0
        %v605 = vsel %vm310, %v597, 0
        %607 = vmatprep.subr.mxu0 %v605
        %608 = vmatpush1.msra.mxu0 %v602
        %609 = vmatprep.subr.mxu0 0.0
        %610 = vmatpush1.msra.mxu0 0.0
        %611 = vmatprep.subr.mxu0 0.0
        %612 = vmatpush1.msra.mxu0 0.0
        %613 = vmatprep.subr.mxu0 0.0
        %614 = vmatpush1.msra.mxu0 0.0
        %615 = vmatprep.subr.mxu0 0.0
        %616 = vmatpush1.msra.mxu0 0.0
        %617 = vmatprep.subr.mxu0 0.0
        %618 = vmatpush1.msra.mxu0 0.0
        %619 = vmatprep.subr.mxu0 0.0
        %620 = vmatpush1.msra.mxu0 0.0
        %621 = vmatprep.subr.mxu0 0.0
        %622 = vmatpush1.msra.mxu0 0.0
        %623 = vmatprep.subr.mxu0 0.0
        %624 = vmatpush1.msra.mxu0 0.0
        %625 = vmatprep.subr.mxu0 0.0
        %626 = vmatpush1.msra.mxu0 0.0
        %627 = vmatprep.subr.mxu0 0.0
        %628 = vmatpush1.msra.mxu0 0.0
        %629 = vmatprep.subr.mxu0 0.0
        %630 = vmatpush1.msra.mxu0 0.0
        %631 = vmatprep.subr.mxu0 0.0
        %632 = vmatpush1.msra.mxu0 0.0
        %633 = vmatprep.subr.mxu0 0.0
        %634 = vmatpush1.msra.mxu0 0.0
        %635 = vmatprep.subr.mxu0 0.0
        %636 = vmatpush1.msra.mxu0 0.0
        %637 = vmatprep.subr.mxu0 0.0
        %638 = vmatpush1.msra.mxu0 0.0
        %639 = vmatprep.subr.mxu0 0.0
        %640 = vmatpush1.msra.mxu0 0.0
        %641 = vmatprep.subr.mxu0 0.0
        %642 = vmatpush1.msra.mxu0 0.0
        %643 = vmatprep.subr.mxu0 0.0
        %644 = vmatpush1.msra.mxu0 0.0
        %645 = vmatprep.subr.mxu0 0.0
        %646 = vmatpush1.msra.mxu0 0.0
        %647 = vmatprep.subr.mxu0 0.0
        %648 = vmatpush1.msra.mxu0 0.0
        %649 = vmatprep.subr.mxu0 0.0
        %650 = vmatpush1.msra.mxu0 0.0
        %651 = vmatprep.subr.mxu0 0.0
        %652 = vmatpush1.msra.mxu0 0.0
        %653 = vmatprep.subr.mxu0 0.0
        %654 = vmatpush1.msra.mxu0 0.0
        %655 = vmatprep.subr.mxu0 0.0
        %656 = vmatpush1.msra.mxu0 0.0
        %657 = vmatprep.subr.mxu0 0.0
        %658 = vmatpush1.msra.mxu0 0.0
        %659 = vmatprep.subr.mxu0 0.0
        %660 = vmatpush1.msra.mxu0 0.0
        %661 = vmatprep.subr.mxu0 0.0
        %662 = vmatpush1.msra.mxu0 0.0
        %663 = vmatprep.subr.mxu0 0.0
        %664 = vmatpush1.msra.mxu0 0.0
        %665 = vmatprep.subr.mxu0 0.0
        %666 = vmatpush1.msra.mxu0 0.0
        %667 = vmatprep.subr.mxu0 0.0
        %668 = vmatpush1.msra.mxu0 0.0
        %669 = vmatprep.subr.mxu0 0.0
        %670 = vmatpush1.msra.mxu0 0.0
        %671 = vmatprep.mubr.f32.mxu0 0.0
        %672 = vmatmul.mubr.f32.gmra.mrb[0].mxu0 %v599
        %v673 = vpop.f32.mrb[0].mxu0
        %v674 = vadd.f32 0.0, %v673
        %v675 = vpop.f32.mrb[0].mxu0
        %v676 = vadd.f32 0.0, %v675
        %677 = vdwg.mxu0
        %v678 = vadd.f32 %v572, %v674
        %v679 = vadd.f32 %v573, %v676
        %s680 = scalar_lea.vmem [#allocation5], 32
        %v681 = vld [vmem:[%s680] sm:$0xff]
        %s682 = scalar_lea.vmem [#allocation7], 8
        %v683 = vld [vmem:[%s682] sm:$0x3]
        %v685 = vlaneseq
        %v686 = vshrl.u32 %v685, 7
        %v687 = vsub.s32 0, %v686
        %v688 = vrot.slane %v683, %v687
        %v689 = vlaneseq
        %v690 = vshrl.u32 %v689, 7
        %v691 = vsub.s32 1, %v690
        %v692 = vrot.slane %v683, %v691
        %v693 = vcombine.low %v688, %v692
        %v695 = vmul.f32 %v254, %v693
        %v697 = vcombine.high %v695, %v695
        %v699 = vsel %vm306, %v681, 0
        %v701 = vsel %vm310, %v695, 0
        %v703 = vsel %vm310, %v697, 0
        %705 = vmatprep.subr.mxu0 %v703
        %706 = vmatpush1.msra.mxu0 %v701
        %707 = vmatprep.subr.mxu0 0.0
        %708 = vmatpush1.msra.mxu0 0.0
        %709 = vmatprep.subr.mxu0 0.0
        %710 = vmatpush1.msra.mxu0 0.0
        %711 = vmatprep.subr.mxu0 0.0
        %712 = vmatpush1.msra.mxu0 0.0
        %713 = vmatprep.subr.mxu0 0.0
        %714 = vmatpush1.msra.mxu0 0.0
        %715 = vmatprep.subr.mxu0 0.0
        %716 = vmatpush1.msra.mxu0 0.0
        %717 = vmatprep.subr.mxu0 0.0
        %718 = vmatpush1.msra.mxu0 0.0
        %719 = vmatprep.subr.mxu0 0.0
        %720 = vmatpush1.msra.mxu0 0.0
        %721 = vmatprep.subr.mxu0 0.0
        %722 = vmatpush1.msra.mxu0 0.0
        %723 = vmatprep.subr.mxu0 0.0
        %724 = vmatpush1.msra.mxu0 0.0
        %725 = vmatprep.subr.mxu0 0.0
        %726 = vmatpush1.msra.mxu0 0.0
        %727 = vmatprep.subr.mxu0 0.0
        %728 = vmatpush1.msra.mxu0 0.0
        %729 = vmatprep.subr.mxu0 0.0
        %730 = vmatpush1.msra.mxu0 0.0
        %731 = vmatprep.subr.mxu0 0.0
        %732 = vmatpush1.msra.mxu0 0.0
        %733 = vmatprep.subr.mxu0 0.0
        %734 = vmatpush1.msra.mxu0 0.0
        %735 = vmatprep.subr.mxu0 0.0
        %736 = vmatpush1.msra.mxu0 0.0
        %737 = vmatprep.subr.mxu0 0.0
        %738 = vmatpush1.msra.mxu0 0.0
        %739 = vmatprep.subr.mxu0 0.0
        %740 = vmatpush1.msra.mxu0 0.0
        %741 = vmatprep.subr.mxu0 0.0
        %742 = vmatpush1.msra.mxu0 0.0
        %743 = vmatprep.subr.mxu0 0.0
        %744 = vmatpush1.msra.mxu0 0.0
        %745 = vmatprep.subr.mxu0 0.0
        %746 = vmatpush1.msra.mxu0 0.0
        %747 = vmatprep.subr.mxu0 0.0
        %748 = vmatpush1.msra.mxu0 0.0
        %749 = vmatprep.subr.mxu0 0.0
        %750 = vmatpush1.msra.mxu0 0.0
        %751 = vmatprep.subr.mxu0 0.0
        %752 = vmatpush1.msra.mxu0 0.0
        %753 = vmatprep.subr.mxu0 0.0
        %754 = vmatpush1.msra.mxu0 0.0
        %755 = vmatprep.subr.mxu0 0.0
        %756 = vmatpush1.msra.mxu0 0.0
        %757 = vmatprep.subr.mxu0 0.0
        %758 = vmatpush1.msra.mxu0 0.0
        %759 = vmatprep.subr.mxu0 0.0
        %760 = vmatpush1.msra.mxu0 0.0
        %761 = vmatprep.subr.mxu0 0.0
        %762 = vmatpush1.msra.mxu0 0.0
        %763 = vmatprep.subr.mxu0 0.0
        %764 = vmatpush1.msra.mxu0 0.0
        %765 = vmatprep.subr.mxu0 0.0
        %766 = vmatpush1.msra.mxu0 0.0
        %767 = vmatprep.subr.mxu0 0.0
        %768 = vmatpush1.msra.mxu0 0.0
        %769 = vmatprep.mubr.f32.mxu0 0.0
        %770 = vmatmul.mubr.f32.gmra.mrb[0].mxu0 %v699
        %v771 = vpop.f32.mrb[0].mxu0
        %v772 = vadd.f32 0.0, %v771
        %v773 = vpop.f32.mrb[0].mxu0
        %v774 = vadd.f32 0.0, %v773
        %775 = vdwg.mxu0
        %v776 = vadd.f32 %v678, %v772
        %v777 = vadd.f32 %v679, %v774
        %778 = vrot.lane.b32.xlu0 %v254, 127
        %v779 = vpop.permute.xlu0 %778
        %780 = vrot.lane.b32.xlu0 %v256, 127
        %v781 = vpop.permute.xlu0 %780
        %vm782 = vcmp.lt.s32.totalorder %v263, 127
        %v783 = vsel %vm782, %v779, %v781
        %v784 = vsel %vm782, %v781, %v779
        %s785 = scalar_lea.vmem [#allocation5], 40
        %v786 = vld [vmem:[%s785] sm:$0xff]
        %s787 = scalar_lea.vmem [#allocation7], 10
        %v788 = vld [vmem:[%s787] sm:$0x3]
        %v790 = vlaneseq
        %v791 = vshrl.u32 %v790, 7
        %v792 = vsub.s32 0, %v791
        %v793 = vrot.slane %v788, %v792
        %v794 = vlaneseq
        %v795 = vshrl.u32 %v794, 7
        %v796 = vsub.s32 1, %v795
        %v797 = vrot.slane %v788, %v796
        %v800 = vmul.f32 %v783, %v793
        %v801 = vmul.f32 %v784, %v797
        %v803 = vsel %vm306, %v786, 0
        %v806 = vsel %vm310, %v800, 0
        %v809 = vsel %vm310, %v801, 0
        %811 = vmatprep.subr.mxu0 %v809
        %812 = vmatpush1.msra.mxu0 %v806
        %813 = vmatprep.subr.mxu0 0.0
        %814 = vmatpush1.msra.mxu0 0.0
        %815 = vmatprep.subr.mxu0 0.0
        %816 = vmatpush1.msra.mxu0 0.0
        %817 = vmatprep.subr.mxu0 0.0
        %818 = vmatpush1.msra.mxu0 0.0
        %819 = vmatprep.subr.mxu0 0.0
        %820 = vmatpush1.msra.mxu0 0.0
        %821 = vmatprep.subr.mxu0 0.0
        %822 = vmatpush1.msra.mxu0 0.0
        %823 = vmatprep.subr.mxu0 0.0
        %824 = vmatpush1.msra.mxu0 0.0
        %825 = vmatprep.subr.mxu0 0.0
        %826 = vmatpush1.msra.mxu0 0.0
        %827 = vmatprep.subr.mxu0 0.0
        %828 = vmatpush1.msra.mxu0 0.0
        %829 = vmatprep.subr.mxu0 0.0
        %830 = vmatpush1.msra.mxu0 0.0
        %831 = vmatprep.subr.mxu0 0.0
        %832 = vmatpush1.msra.mxu0 0.0
        %833 = vmatprep.subr.mxu0 0.0
        %834 = vmatpush1.msra.mxu0 0.0
        %835 = vmatprep.subr.mxu0 0.0
        %836 = vmatpush1.msra.mxu0 0.0
        %837 = vmatprep.subr.mxu0 0.0
        %838 = vmatpush1.msra.mxu0 0.0
        %839 = vmatprep.subr.mxu0 0.0
        %840 = vmatpush1.msra.mxu0 0.0
        %841 = vmatprep.subr.mxu0 0.0
        %842 = vmatpush1.msra.mxu0 0.0
        %843 = vmatprep.subr.mxu0 0.0
        %844 = vmatpush1.msra.mxu0 0.0
        %845 = vmatprep.subr.mxu0 0.0
        %846 = vmatpush1.msra.mxu0 0.0
        %847 = vmatprep.subr.mxu0 0.0
        %848 = vmatpush1.msra.mxu0 0.0
        %849 = vmatprep.subr.mxu0 0.0
        %850 = vmatpush1.msra.mxu0 0.0
        %851 = vmatprep.subr.mxu0 0.0
        %852 = vmatpush1.msra.mxu0 0.0
        %853 = vmatprep.subr.mxu0 0.0
        %854 = vmatpush1.msra.mxu0 0.0
        %855 = vmatprep.subr.mxu0 0.0
        %856 = vmatpush1.msra.mxu0 0.0
        %857 = vmatprep.subr.mxu0 0.0
        %858 = vmatpush1.msra.mxu0 0.0
        %859 = vmatprep.subr.mxu0 0.0
        %860 = vmatpush1.msra.mxu0 0.0
        %861 = vmatprep.subr.mxu0 0.0
        %862 = vmatpush1.msra.mxu0 0.0
        %863 = vmatprep.subr.mxu0 0.0
        %864 = vmatpush1.msra.mxu0 0.0
        %865 = vmatprep.subr.mxu0 0.0
        %866 = vmatpush1.msra.mxu0 0.0
        %867 = vmatprep.subr.mxu0 0.0
        %868 = vmatpush1.msra.mxu0 0.0
        %869 = vmatprep.subr.mxu0 0.0
        %870 = vmatpush1.msra.mxu0 0.0
        %871 = vmatprep.subr.mxu0 0.0
        %872 = vmatpush1.msra.mxu0 0.0
        %873 = vmatprep.subr.mxu0 0.0
        %874 = vmatpush1.msra.mxu0 0.0
        %875 = vmatprep.mubr.f32.mxu0 0.0
        %876 = vmatmul.mubr.f32.gmra.mrb[0].mxu0 %v803
        %v877 = vpop.f32.mrb[0].mxu0
        %v878 = vadd.f32 0.0, %v877
        %v879 = vpop.f32.mrb[0].mxu0
        %v880 = vadd.f32 0.0, %v879
        %881 = vdwg.mxu0
        %v882 = vadd.f32 %v776, %v878
        %v883 = vadd.f32 %v777, %v880
        %884 = vrot.lane.b32.xlu0 %v254, 113
        %v885 = vpop.permute.xlu0 %884
        %886 = vrot.lane.b32.xlu0 %v256, 113
        %v887 = vpop.permute.xlu0 %886
        %vm888 = vcmp.lt.s32.totalorder %v263, 113
        %v889 = vsel %vm888, %v885, %v887
        %v890 = vsel %vm888, %v887, %v885
        %s891 = scalar_lea.vmem [#allocation5], 48
        %v892 = vld [vmem:[%s891] sm:$0xff]
        %s893 = scalar_lea.vmem [#allocation7], 12
        %v894 = vld [vmem:[%s893] sm:$0x3]
        %v896 = vlaneseq
        %v897 = vshrl.u32 %v896, 7
        %v898 = vsub.s32 0, %v897
        %v899 = vrot.slane %v894, %v898
        %v900 = vlaneseq
        %v901 = vshrl.u32 %v900, 7
        %v902 = vsub.s32 1, %v901
        %v903 = vrot.slane %v894, %v902
        %v906 = vmul.f32 %v889, %v899
        %v907 = vmul.f32 %v890, %v903
        %v909 = vsel %vm306, %v892, 0
        %v912 = vsel %vm310, %v906, 0
        %v915 = vsel %vm310, %v907, 0
        %917 = vmatprep.subr.mxu0 %v915
        %918 = vmatpush1.msra.mxu0 %v912
        %919 = vmatprep.subr.mxu0 0.0
        %920 = vmatpush1.msra.mxu0 0.0
        %921 = vmatprep.subr.mxu0 0.0
        %922 = vmatpush1.msra.mxu0 0.0
        %923 = vmatprep.subr.mxu0 0.0
        %924 = vmatpush1.msra.mxu0 0.0
        %925 = vmatprep.subr.mxu0 0.0
        %926 = vmatpush1.msra.mxu0 0.0
        %927 = vmatprep.subr.mxu0 0.0
        %928 = vmatpush1.msra.mxu0 0.0
        %929 = vmatprep.subr.mxu0 0.0
        %930 = vmatpush1.msra.mxu0 0.0
        %931 = vmatprep.subr.mxu0 0.0
        %932 = vmatpush1.msra.mxu0 0.0
        %933 = vmatprep.subr.mxu0 0.0
        %934 = vmatpush1.msra.mxu0 0.0
        %935 = vmatprep.subr.mxu0 0.0
        %936 = vmatpush1.msra.mxu0 0.0
        %937 = vmatprep.subr.mxu0 0.0
        %938 = vmatpush1.msra.mxu0 0.0
        %939 = vmatprep.subr.mxu0 0.0
        %940 = vmatpush1.msra.mxu0 0.0
        %941 = vmatprep.subr.mxu0 0.0
        %942 = vmatpush1.msra.mxu0 0.0
        %943 = vmatprep.subr.mxu0 0.0
        %944 = vmatpush1.msra.mxu0 0.0
        %945 = vmatprep.subr.mxu0 0.0
        %946 = vmatpush1.msra.mxu0 0.0
        %947 = vmatprep.subr.mxu0 0.0
        %948 = vmatpush1.msra.mxu0 0.0
        %949 = vmatprep.subr.mxu0 0.0
        %950 = vmatpush1.msra.mxu0 0.0
        %951 = vmatprep.subr.mxu0 0.0
        %952 = vmatpush1.msra.mxu0 0.0
        %953 = vmatprep.subr.mxu0 0.0
        %954 = vmatpush1.msra.mxu0 0.0
        %955 = vmatprep.subr.mxu0 0.0
        %956 = vmatpush1.msra.mxu0 0.0
        %957 = vmatprep.subr.mxu0 0.0
        %958 = vmatpush1.msra.mxu0 0.0
        %959 = vmatprep.subr.mxu0 0.0
        %960 = vmatpush1.msra.mxu0 0.0
        %961 = vmatprep.subr.mxu0 0.0
        %962 = vmatpush1.msra.mxu0 0.0
        %963 = vmatprep.subr.mxu0 0.0
        %964 = vmatpush1.msra.mxu0 0.0
        %965 = vmatprep.subr.mxu0 0.0
        %966 = vmatpush1.msra.mxu0 0.0
        %967 = vmatprep.subr.mxu0 0.0
        %968 = vmatpush1.msra.mxu0 0.0
        %969 = vmatprep.subr.mxu0 0.0
        %970 = vmatpush1.msra.mxu0 0.0
        %971 = vmatprep.subr.mxu0 0.0
        %972 = vmatpush1.msra.mxu0 0.0
        %973 = vmatprep.subr.mxu0 0.0
        %974 = vmatpush1.msra.mxu0 0.0
        %975 = vmatprep.subr.mxu0 0.0
        %976 = vmatpush1.msra.mxu0 0.0
        %977 = vmatprep.subr.mxu0 0.0
        %978 = vmatpush1.msra.mxu0 0.0
        %979 = vmatprep.subr.mxu0 0.0
        %980 = vmatpush1.msra.mxu0 0.0
        %981 = vmatprep.mubr.f32.mxu0 0.0
        %982 = vmatmul.mubr.f32.gmra.mrb[0].mxu0 %v909
        %v983 = vpop.f32.mrb[0].mxu0
        %v984 = vadd.f32 0.0, %v983
        %v985 = vpop.f32.mrb[0].mxu0
        %v986 = vadd.f32 0.0, %v985
        %987 = vdwg.mxu0
        %v988 = vadd.f32 %v882, %v984
        %v989 = vadd.f32 %v883, %v986
        %990 = vrot.lane.b32.xlu0 %v254, 112
        %v991 = vpop.permute.xlu0 %990
        %992 = vrot.lane.b32.xlu0 %v256, 112
        %v993 = vpop.permute.xlu0 %992
        %vm994 = vcmp.lt.s32.totalorder %v263, 112
        %v995 = vsel %vm994, %v991, %v993
        %v996 = vsel %vm994, %v993, %v991
        %s997 = scalar_lea.vmem [#allocation5], 56
        %v998 = vld [vmem:[%s997] sm:$0xff]
        %s999 = scalar_lea.vmem [#allocation7], 14
        %v1000 = vld [vmem:[%s999] sm:$0x3]
        %v1002 = vlaneseq
        %v1003 = vshrl.u32 %v1002, 7
        %v1004 = vsub.s32 0, %v1003
        %v1005 = vrot.slane %v1000, %v1004
        %v1006 = vlaneseq
        %v1007 = vshrl.u32 %v1006, 7
        %v1008 = vsub.s32 1, %v1007
        %v1009 = vrot.slane %v1000, %v1008
        %v1012 = vmul.f32 %v995, %v1005
        %v1013 = vmul.f32 %v996, %v1009
        %v1015 = vsel %vm306, %v998, 0
        %v1018 = vsel %vm310, %v1012, 0
        %v1021 = vsel %vm310, %v1013, 0
        %1023 = vmatprep.subr.mxu0 %v1021
        %1024 = vmatpush1.msra.mxu0 %v1018
        %1025 = vmatprep.subr.mxu0 0.0
        %1026 = vmatpush1.msra.mxu0 0.0
        %1027 = vmatprep.subr.mxu0 0.0
        %1028 = vmatpush1.msra.mxu0 0.0
        %1029 = vmatprep.subr.mxu0 0.0
        %1030 = vmatpush1.msra.mxu0 0.0
        %1031 = vmatprep.subr.mxu0 0.0
        %1032 = vmatpush1.msra.mxu0 0.0
        %1033 = vmatprep.subr.mxu0 0.0
        %1034 = vmatpush1.msra.mxu0 0.0
        %1035 = vmatprep.subr.mxu0 0.0
        %1036 = vmatpush1.msra.mxu0 0.0
        %1037 = vmatprep.subr.mxu0 0.0
        %1038 = vmatpush1.msra.mxu0 0.0
        %1039 = vmatprep.subr.mxu0 0.0
        %1040 = vmatpush1.msra.mxu0 0.0
        %1041 = vmatprep.subr.mxu0 0.0
        %1042 = vmatpush1.msra.mxu0 0.0
        %1043 = vmatprep.subr.mxu0 0.0
        %1044 = vmatpush1.msra.mxu0 0.0
        %1045 = vmatprep.subr.mxu0 0.0
        %1046 = vmatpush1.msra.mxu0 0.0
        %1047 = vmatprep.subr.mxu0 0.0
        %1048 = vmatpush1.msra.mxu0 0.0
        %1049 = vmatprep.subr.mxu0 0.0
        %1050 = vmatpush1.msra.mxu0 0.0
        %1051 = vmatprep.subr.mxu0 0.0
        %1052 = vmatpush1.msra.mxu0 0.0
        %1053 = vmatprep.subr.mxu0 0.0
        %1054 = vmatpush1.msra.mxu0 0.0
        %1055 = vmatprep.subr.mxu0 0.0
        %1056 = vmatpush1.msra.mxu0 0.0
        %1057 = vmatprep.subr.mxu0 0.0
        %1058 = vmatpush1.msra.mxu0 0.0
        %1059 = vmatprep.subr.mxu0 0.0
        %1060 = vmatpush1.msra.mxu0 0.0
        %1061 = vmatprep.subr.mxu0 0.0
        %1062 = vmatpush1.msra.mxu0 0.0
        %1063 = vmatprep.subr.mxu0 0.0
        %1064 = vmatpush1.msra.mxu0 0.0
        %1065 = vmatprep.subr.mxu0 0.0
        %1066 = vmatpush1.msra.mxu0 0.0
        %1067 = vmatprep.subr.mxu0 0.0
        %1068 = vmatpush1.msra.mxu0 0.0
        %1069 = vmatprep.subr.mxu0 0.0
        %1070 = vmatpush1.msra.mxu0 0.0
        %1071 = vmatprep.subr.mxu0 0.0
        %1072 = vmatpush1.msra.mxu0 0.0
        %1073 = vmatprep.subr.mxu0 0.0
        %1074 = vmatpush1.msra.mxu0 0.0
        %1075 = vmatprep.subr.mxu0 0.0
        %1076 = vmatpush1.msra.mxu0 0.0
        %1077 = vmatprep.subr.mxu0 0.0
        %1078 = vmatpush1.msra.mxu0 0.0
        %1079 = vmatprep.subr.mxu0 0.0
        %1080 = vmatpush1.msra.mxu0 0.0
        %1081 = vmatprep.subr.mxu0 0.0
        %1082 = vmatpush1.msra.mxu0 0.0
        %1083 = vmatprep.subr.mxu0 0.0
        %1084 = vmatpush1.msra.mxu0 0.0
        %1085 = vmatprep.subr.mxu0 0.0
        %1086 = vmatpush1.msra.mxu0 0.0
        %1087 = vmatprep.mubr.f32.mxu0 0.0
        %1088 = vmatmul.mubr.f32.gmra.mrb[0].mxu0 %v1015
        %v1089 = vpop.f32.mrb[0].mxu0
        %v1090 = vadd.f32 0.0, %v1089
        %v1091 = vpop.f32.mrb[0].mxu0
        %v1092 = vadd.f32 0.0, %v1091
        %1093 = vdwg.mxu0
        %v1094 = vadd.f32 %v988, %v1090
        %v1095 = vadd.f32 %v989, %v1092
        %1096 = vrot.lane.b32.xlu0 %v254, 111
        %v1097 = vpop.permute.xlu0 %1096
        %1098 = vrot.lane.b32.xlu0 %v256, 111
        %v1099 = vpop.permute.xlu0 %1098
        %vm1100 = vcmp.lt.s32.totalorder %v263, 111
        %v1101 = vsel %vm1100, %v1097, %v1099
        %v1102 = vsel %vm1100, %v1099, %v1097
        %s1103 = scalar_lea.vmem [#allocation5], 64
        %v1104 = vld [vmem:[%s1103] sm:$0xff]
        %s1105 = scalar_lea.vmem [#allocation7], 16
        %v1106 = vld [vmem:[%s1105] sm:$0x3]
        %v1108 = vlaneseq
        %v1109 = vshrl.u32 %v1108, 7
        %v1110 = vsub.s32 0, %v1109
        %v1111 = vrot.slane %v1106, %v1110
        %v1112 = vlaneseq
        %v1113 = vshrl.u32 %v1112, 7
        %v1114 = vsub.s32 1, %v1113
        %v1115 = vrot.slane %v1106, %v1114
        %v1118 = vmul.f32 %v1101, %v1111
        %v1119 = vmul.f32 %v1102, %v1115
        %v1121 = vsel %vm306, %v1104, 0
        %v1124 = vsel %vm310, %v1118, 0
        %v1127 = vsel %vm310, %v1119, 0
        %1129 = vmatprep.subr.mxu0 %v1127
        %1130 = vmatpush1.msra.mxu0 %v1124
        %1131 = vmatprep.subr.mxu0 0.0
        %1132 = vmatpush1.msra.mxu0 0.0
        %1133 = vmatprep.subr.mxu0 0.0
        %1134 = vmatpush1.msra.mxu0 0.0
        %1135 = vmatprep.subr.mxu0 0.0
        %1136 = vmatpush1.msra.mxu0 0.0
        %1137 = vmatprep.subr.mxu0 0.0
        %1138 = vmatpush1.msra.mxu0 0.0
        %1139 = vmatprep.subr.mxu0 0.0
        %1140 = vmatpush1.msra.mxu0 0.0
        %1141 = vmatprep.subr.mxu0 0.0
        %1142 = vmatpush1.msra.mxu0 0.0
        %1143 = vmatprep.subr.mxu0 0.0
        %1144 = vmatpush1.msra.mxu0 0.0
        %1145 = vmatprep.subr.mxu0 0.0
        %1146 = vmatpush1.msra.mxu0 0.0
        %1147 = vmatprep.subr.mxu0 0.0
        %1148 = vmatpush1.msra.mxu0 0.0
        %1149 = vmatprep.subr.mxu0 0.0
        %1150 = vmatpush1.msra.mxu0 0.0
        %1151 = vmatprep.subr.mxu0 0.0
        %1152 = vmatpush1.msra.mxu0 0.0
        %1153 = vmatprep.subr.mxu0 0.0
        %1154 = vmatpush1.msra.mxu0 0.0
        %1155 = vmatprep.subr.mxu0 0.0
        %1156 = vmatpush1.msra.mxu0 0.0
        %1157 = vmatprep.subr.mxu0 0.0
        %1158 = vmatpush1.msra.mxu0 0.0
        %1159 = vmatprep.subr.mxu0 0.0
        %1160 = vmatpush1.msra.mxu0 0.0
        %1161 = vmatprep.subr.mxu0 0.0
        %1162 = vmatpush1.msra.mxu0 0.0
        %1163 = vmatprep.subr.mxu0 0.0
        %1164 = vmatpush1.msra.mxu0 0.0
        %1165 = vmatprep.subr.mxu0 0.0
        %1166 = vmatpush1.msra.mxu0 0.0
        %1167 = vmatprep.subr.mxu0 0.0
        %1168 = vmatpush1.msra.mxu0 0.0
        %1169 = vmatprep.subr.mxu0 0.0
        %1170 = vmatpush1.msra.mxu0 0.0
        %1171 = vmatprep.subr.mxu0 0.0
        %1172 = vmatpush1.msra.mxu0 0.0
        %1173 = vmatprep.subr.mxu0 0.0
        %1174 = vmatpush1.msra.mxu0 0.0
        %1175 = vmatprep.subr.mxu0 0.0
        %1176 = vmatpush1.msra.mxu0 0.0
        %1177 = vmatprep.subr.mxu0 0.0
        %1178 = vmatpush1.msra.mxu0 0.0
        %1179 = vmatprep.subr.mxu0 0.0
        %1180 = vmatpush1.msra.mxu0 0.0
        %1181 = vmatprep.subr.mxu0 0.0
        %1182 = vmatpush1.msra.mxu0 0.0
        %1183 = vmatprep.subr.mxu0 0.0
        %1184 = vmatpush1.msra.mxu0 0.0
        %1185 = vmatprep.subr.mxu0 0.0
        %1186 = vmatpush1.msra.mxu0 0.0
        %1187 = vmatprep.subr.mxu0 0.0
        %1188 = vmatpush1.msra.mxu0 0.0
        %1189 = vmatprep.subr.mxu0 0.0
        %1190 = vmatpush1.msra.mxu0 0.0
        %1191 = vmatprep.subr.mxu0 0.0
        %1192 = vmatpush1.msra.mxu0 0.0
        %1193 = vmatprep.mubr.f32.mxu0 0.0
        %1194 = vmatmul.mubr.f32.gmra.mrb[0].mxu0 %v1121
        %v1195 = vpop.f32.mrb[0].mxu0
        %v1196 = vadd.f32 0.0, %v1195
        %v1197 = vpop.f32.mrb[0].mxu0
        %v1198 = vadd.f32 0.0, %v1197
        %1199 = vdwg.mxu0
        %v1200 = vadd.f32 %v1094, %v1196
        %v1201 = vadd.f32 %v1095, %v1198
        %1202 = vst [vmem:[%s246] sm:$0xff] %v1200
        %1203 = vst [vmem:[%s246 + $0x8] sm:$0xff] %v1201
        %v1204 = vadd.f32 %v1200, %v1201
        %1205 = vadd.xlane.f32.xlu0 %v1204
        %v1206 = vpop.xlane.xlu0 %1205
        %vm1207 = vcmask 7168
        %1208 = vst.msk [vmem:[%s253] sm:$0xff] %vm1207, %v1206
        %v1209 = vmul.f32 %v1200, %v1200
        %v1210 = vmul.f32 %v1201, %v1201
        %v1211 = vadd.f32 %v1209, %v1210
        %1212 = vadd.xlane.f32.xlu0 %v1211
        %v1213 = vpop.xlane.xlu0 %1212
        %vm1214 = vcmask 15368
        %1215 = vst.msk [vmem:[%s253] sm:$0xff] %vm1214, %v1213
        %s1216 = sand.u32 %s102, 1
        %s1217 = scalar_lea.sflag [#allocation4], %s1216
        %s1218 = sand.u32 %s102, 1
        %s1219 = smul.addr %s1218, 16
        %s1220 = scalar_lea.vmem [#allocation8], %s1219
        %s1221 = sand.u32 %s128, 1
        %s1222 = scalar_lea.sflag [#allocation10], %s1221
        %s1223 = sand.u32 %s128, 1
        %s1224 = smul.addr %s1223, 8
        %s1225 = scalar_lea.vmem [#allocation9], %s1224
        // Predicated region
        $region45: #{resnest_conv_block.2} parent=31 // pred_check
          %p1226 = pneg %p112
        $region46: #{resnest_conv_block.2} parent=31 // pred_check_branch
          %1228 = sbr.rel (%p1226) target = $region48
        $region47: #{resnest_conv_block.2} parent=31 // pred_region
          %s1230 = ssub.s32 256, 256
          %1231 = vsyncadd %s1217, %s1230
          %s1232 = smul.addr %s26, 2
          %s1233 = smul.addr %s1232, 128
          %s1234 = scalar_lea.hbm %s3, %s1233
          %s1236 = sshll.u32 %s1220, 4
          %s1237 = int_to_ptr.vmem [resolvable:$true] %s1236
          %1239 = dma.vmem_to_hbm [thread:$0]  %s1237, 256, %s1234, %s1217
        $region48: #{resnest_conv_block.2} parent=31 // pred_fallthru
          _
        // Predicated region
        $region49: #{resnest_conv_block.2} parent=31 // pred_check
          %p1240 = pneg %p138
        $region50: #{resnest_conv_block.2} parent=31 // pred_check_branch
          %1242 = sbr.rel (%p1240) target = $region52
        $region51: #{resnest_conv_block.2} parent=31 // pred_region
          %s1244 = ssub.s32 128, 128
          %1245 = vsyncadd %s1222, %s1244
          %s1246 = smul.addr %s26, 128
          %s1247 = scalar_lea.hbm %s4, %s1246
          %s1249 = sshll.u32 %s1225, 4
          %s1250 = int_to_ptr.vmem [resolvable:$true] %s1249
          %1252 = dma.vmem_to_hbm [thread:$0]  %s1250, 128, %s1247, %s1222
        $region52: #{resnest_conv_block.2} parent=31 // pred_fallthru
          _
      $region32: #{resnest_conv_block.2} parent=5 // pred_fallthru
        _
      %p1253 = scmp.le.s32.totalorder 2, %s21
      // Predicated region
      $region53: #{resnest_conv_block.2} parent=5 // pred_check
        %p1254 = pneg %p1253
      $region54: #{resnest_conv_block.2} parent=5 // pred_check_branch
        %1256 = sbr.rel (%p1254) target = $region56
      $region55: #{resnest_conv_block.2} parent=5 // pred_region
        %s1257 = ssub.s32 %s21, 2
        // Predicated region
        $region57: #{resnest_conv_block.2} parent=55 // pred_check
          %p1258 = pneg %p118
        $region58: #{resnest_conv_block.2} parent=55 // pred_check_branch
          %1260 = sbr.rel (%p1258) target = $region60
        $region59: #{resnest_conv_block.2} parent=55 // pred_region
          %s1261 = sand.u32 %s103, 1
          %s1262 = scalar_lea.sflag [#allocation4], %s1261
          %s1263 = sand.u32 %s103, 1
          %s1264 = smul.addr %s1263, 16
          %s1265 = scalar_lea.vmem [#allocation8], %s1264
          %1266 = dma.done %s1262, 256
        $region60: #{resnest_conv_block.2} parent=55 // pred_fallthru
          _
        // Predicated region
        $region61: #{resnest_conv_block.2} parent=55 // pred_check
          %p1267 = pneg %p144
        $region62: #{resnest_conv_block.2} parent=55 // pred_check_branch
          %1269 = sbr.rel (%p1267) target = $region64
        $region63: #{resnest_conv_block.2} parent=55 // pred_region
          %s1270 = sand.u32 %s129, 1
          %s1271 = scalar_lea.sflag [#allocation10], %s1270
          %s1272 = sand.u32 %s129, 1
          %s1273 = smul.addr %s1272, 8
          %s1274 = scalar_lea.vmem [#allocation9], %s1273
          %1275 = dma.done %s1271, 128
        $region64: #{resnest_conv_block.2} parent=55 // pred_fallthru
          _
      $region56: #{resnest_conv_block.2} parent=5 // pred_fallthru
        _
    $region6: #{resnest_conv_block.2} parent=1 // loop_footer
      %s25 = sadd.s32 1, %s21
    $region7: #{resnest_conv_block.2} parent=1 // loop_footer_branch
      %20 = sbr.rel target = $region3
    $region8: #{resnest_conv_block.2} parent=1 // loop_exit
      _
    %1276 = vsyncpa [#allocation3], 1
    %s1277 = scalar_lea.sflag [#allocation3], 1
    %1278 = vsyncpa %s1277, 1
    %1279 = vsyncpa [#allocation6], 1
    %1280 = vsyncpa [#allocation4], 1
    %s1281 = scalar_lea.sflag [#allocation4], 1
    %1282 = vsyncpa %s1281, 1
    %1283 = vsyncpa [#allocation10], 1
    %s1284 = scalar_lea.sflag [#allocation10], 1
    %1285 = vsyncpa %s1284, 1

</llo_original>
